<compile_context>
chip_gen: v7x
topology: tpu7x:2x2x1
jax: 0.10.0
libtpu: 0.0.40
codegen_flags: <defaults>
</compile_context>

<pallas_src>
import jax
import jax.numpy as jnp
from jax.experimental import pallas as pl
from jax.experimental.pallas import tpu as pltpu

# ------------------------- hyper-parameters (deterministic) -------------------------
N_UNIT, N_TREATED = 16, 4
BATCH = N_UNIT + N_TREATED          # full-batch training, batch_ind = arange(BATCH)
SEQ_T, IN_DIM, HIDDEN, OUT_T = 8, 8, 128, 4   # HIDDEN=128 -> lane-dense representation

REG_B = 0.1
LAM_EXPRESS = 1.0
LAM_RECON = 0.5
LAM_PROGNOSTIC = 0.3
TAU = 1.0
NEG_BIG = -1e30                     # finite sentinel (avoids -inf - -inf = NaN)

_VMEM = lambda: pl.BlockSpec(memory_space=pltpu.MemorySpace.VMEM)


# ------------------------------- fused forward kernel -------------------------------
def synctwin_kernel(xf_ref, mf_ref, Wh_ref, bh_ref, wa_ref, Wd_ref, bd_ref,
                    B_ref, C0_ref, bcol_ref, brow_ref, gum_ref,
                    yb_ref, yc_ref, ym_ref, loss_ref, C_ref):
    TB, D = xf_ref.shape            # rows ordered unit-major: j = b*T + t
    H = Wh_ref.shape[1]
    batch = C_ref.shape[0]
    T = TB // batch
    n_rows, n_unit = B_ref.shape
    Tf = float(T)

    xf = xf_ref[...]                # (TB, D)
    mf = mf_ref[...]                # (TB, D)

    # -------- encoder: one batched matmul + masked softmax over time ---------------
    h = jnp.tanh(jnp.dot(xf, Wh_ref[...], preferred_element_type=jnp.float32)
                 + bh_ref[...])                                             # (TB, H)
    s = jnp.dot(h, wa_ref[...], preferred_element_type=jnp.float32)         # (TB, 1)
    present = jnp.max(mf, axis=-1, keepdims=True)                           # (TB, 1)
    logits = jnp.where(present > 0.0, s, NEG_BIG)
    e = jnp.exp(logits - jnp.max(logits))                                   # global-max stabilized

    # selection matrices built from iota (no in-kernel reshapes / relayouts):
    #   pool[b, j]  = 1  iff  b*T <= j < (b+1)*T        (batch, TB)
    #   poolT[j, b] = 1  iff  b*T <= j < (b+1)*T        (TB, batch)
    rB = jax.lax.broadcasted_iota(jnp.int32, (batch, TB), 0).astype(jnp.float32)
    cB = jax.lax.broadcasted_iota(jnp.int32, (batch, TB), 1).astype(jnp.float32)
    lo = rB * Tf
    pool = jnp.logical_and(cB >= lo, cB < lo + Tf).astype(jnp.float32)
    rT = jax.lax.broadcasted_iota(jnp.int32, (TB, batch), 0).astype(jnp.float32)
    cT = jax.lax.broadcasted_iota(jnp.int32, (TB, batch), 1).astype(jnp.float32)
    loT = cT * Tf
    poolT = jnp.logical_and(rT >= loT, rT < loT + Tf).astype(jnp.float32)

    denom = jnp.dot(pool, e, preferred_element_type=jnp.float32)            # (batch, 1)
    Cun = jnp.dot(pool, e * h, preferred_element_type=jnp.float32)          # (batch, H)
    C = Cun / jnp.maximum(denom, 1e-30)                                     # attention-pooled rep
    C_ref[...] = C

    # -------- decoder (linear, constant over time; x_hat not materialized) ---------
    xr = jnp.dot(C, Wd_ref[...], preferred_element_type=jnp.float32) + bd_ref[...]   # (batch, D)
    xr_full = jnp.dot(poolT, xr, preferred_element_type=jnp.float32)        # (TB, D) broadcast over t
    rerr = (xf - xr_full) * mf
    rec_loss = jnp.sum(rerr * rerr) / jnp.sum(mf) * LAM_RECON

    # -------- B gather (one-hot matmul) + diagonal mask + gumbel softmax -----------
    bcol = bcol_ref[...]                                                    # (batch, 1) int32
    cG = jax.lax.broadcasted_iota(jnp.int32, (batch, n_rows), 1)
    onehot = (cG == bcol).astype(jnp.float32)
    B_red = jnp.dot(onehot, B_ref[...], preferred_element_type=jnp.float32)  # (batch, n_unit)

    # NOTE: torch's get_B_reduced adds -inf at positions (p, p) for p in batch_ind
    # (after the gather); we replicate that literal behaviour.  It equals masking the
    # self-column (i, batch_ind[i]) only when batch_ind == arange, which is the
    # full-batch setting used here.
    brow = brow_ref[...]                                                    # (1, batch) int32
    ri = jax.lax.broadcasted_iota(jnp.int32, (batch, batch), 0)
    member = jnp.max((ri == brow).astype(jnp.float32), axis=1, keepdims=True)  # (batch, 1)
    r0 = jax.lax.broadcasted_iota(jnp.int32, (batch, n_unit), 0)
    c1 = jax.lax.broadcasted_iota(jnp.int32, (batch, n_unit), 1)
    diag_hit = jnp.logical_and(r0 == c1, member > 0.0)
    glog = jnp.where(diag_hit, NEG_BIG, B_red)

    g = (glog + gum_ref[...]) / TAU                                         # gumbel softmax (soft)
    g = g - jnp.max(g, axis=1, keepdims=True)
    eg = jnp.exp(g)
    B_gs = eg / jnp.sum(eg, axis=1, keepdims=True)                          # (batch, n_unit)

    # -------- self-expressive loss --------------------------------------------------
    # TODO(synk): torch filters NaNs (err[~isnan]); inputs assumed NaN-free here.
    err = C - jnp.dot(B_gs, C0_ref[...], preferred_element_type=jnp.float32)
    se_loss = LAM_EXPRESS * (jnp.mean(err * err) + REG_B * jnp.mean(B_gs * B_gs))

    # -------- prognostic loss -------------------------------------------------------
    yhat = jnp.dot(B_gs, yc_ref[...], preferred_element_type=jnp.float32)   # (batch, OUT_T)
    yd = yb_ref[...] - yhat
    prog_loss = jnp.sum(yd * yd * ym_ref[...]) / jnp.sum(ym_ref[...]) * LAM_PROGNOSTIC

    # (1,1) VMEM scalar output: single masked store, accepted knowingly (cheapest robust path).
    loss_ref[...] = jnp.reshape(se_loss + rec_loss + prog_loss, (1, 1))


# ------------------------------------ forward glue -----------------------------------
def init_params(key):
    ks = jax.random.split(key, 5)
    return {
        "Wh": jax.random.normal(ks[0], (IN_DIM, HIDDEN), jnp.float32) * 0.1,
        "bh": jax.random.normal(ks[1], (1, HIDDEN), jnp.float32) * 0.1,
        "wa": jax.random.normal(ks[2], (HIDDEN, 1), jnp.float32) * 0.1,
        "Wd": jax.random.normal(ks[3], (HIDDEN, IN_DIM), jnp.float32) * 0.1,
        "bd": jax.random.normal(ks[4], (1, IN_DIM), jnp.float32) * 0.1,
        "B": jnp.ones((N_UNIT + N_TREATED, N_UNIT), jnp.float32) * 1e-4,
        "C0": jnp.zeros((N_UNIT, HIDDEN), jnp.float32),
    }


def synctwin_forward(params, x, t, mask, batch_ind, y_batch, y_control, y_mask, rng_key):
    del t  # TODO(synk): simplified encoder/decoder ignore absolute time values
    T, B, D = x.shape
    batch = batch_ind.shape[0]
    assert batch == B
    n_unit = params["B"].shape[1]
    H = params["Wh"].shape[1]

    # wrapper-side layout plumbing: unit-major flatten so each unit's T rows are contiguous
    xf = jnp.transpose(x, (1, 0, 2)).reshape(B * T, D)
    mf = jnp.transpose(mask, (1, 0, 2)).reshape(B * T, D)

    # gumbel noise (distributionally matches torch's F.gumbel_softmax sampling)
    gumbel = jax.random.gumbel(rng_key, (batch, n_unit), jnp.float32)
    bcol = batch_ind.reshape(batch, 1).astype(jnp.int32)
    brow = batch_ind.reshape(1, batch).astype(jnp.int32)
    ym2 = y_mask.reshape(batch, 1).astype(jnp.float32)

    loss, C = pl.pallas_call(
        synctwin_kernel,
        out_shape=(jax.ShapeDtypeStruct((1, 1), jnp.float32),
                   jax.ShapeDtypeStruct((batch, H), jnp.float32)),
        in_specs=[_VMEM()] * 15,
        out_specs=(_VMEM(), _VMEM()),
    )(xf, mf, params["Wh"], params["bh"], params["wa"], params["Wd"], params["bd"],
      params["B"], params["C0"], bcol, brow, gumbel, y_batch, y_control, ym2)
    return loss[0, 0], C


if __name__ == "__main__":
    key = jax.random.PRNGKey(0)
    ks = jax.random.split(key, 8)

    x = jax.random.normal(ks[0], (SEQ_T, BATCH, IN_DIM), jnp.float32)
    t = jnp.broadcast_to(jnp.arange(SEQ_T, dtype=jnp.float32)[:, None], (SEQ_T, BATCH))
    mask = (jax.random.uniform(ks[1], (SEQ_T, BATCH, IN_DIM)) > 0.2).astype(jnp.float32)
    mask = mask.at[0].set(1.0)  # ensure every unit has at least one observed step
    batch_ind = jnp.arange(BATCH, dtype=jnp.int32)
    y_batch = jax.random.normal(ks[2], (BATCH, OUT_T), jnp.float32)
    y_control = jax.random.normal(ks[3], (N_UNIT, OUT_T), jnp.float32)
    y_mask = jnp.ones((BATCH,), jnp.float32).at[-1].set(0.0)

    params = init_params(ks[4])

    loss, C = synctwin_forward(params, x, t, mask, batch_ind,
                               y_batch, y_control, y_mask, ks[5])
    jax.block_until_ready((loss, C))
    assert C.shape == (BATCH, HIDDEN)
    assert loss.shape == ()
    assert bool(jnp.isfinite(loss))
    print("KERNEL_OK")
</pallas_src>

<mosaic_0001>
module attributes {stable_mosaic.version = 11 : i64} {
  func.func @synctwin_kernel(%arg0: memref<160x8xf32, #tpu.memory_space<vmem>>, %arg1: memref<160x8xf32, #tpu.memory_space<vmem>>, %arg2: memref<8x128xf32, #tpu.memory_space<vmem>>, %arg3: memref<1x128xf32, #tpu.memory_space<vmem>>, %arg4: memref<128x1xf32, #tpu.memory_space<vmem>>, %arg5: memref<128x8xf32, #tpu.memory_space<vmem>>, %arg6: memref<1x8xf32, #tpu.memory_space<vmem>>, %arg7: memref<20x16xf32, #tpu.memory_space<vmem>>, %arg8: memref<16x128xf32, #tpu.memory_space<vmem>>, %arg9: memref<20x1xi32, #tpu.memory_space<vmem>>, %arg10: memref<1x20xi32, #tpu.memory_space<vmem>>, %arg11: memref<20x16xf32, #tpu.memory_space<vmem>>, %arg12: memref<20x4xf32, #tpu.memory_space<vmem>>, %arg13: memref<16x4xf32, #tpu.memory_space<vmem>>, %arg14: memref<20x1xf32, #tpu.memory_space<vmem>>, %arg15: memref<1x1xf32, #tpu.memory_space<vmem>>, %arg16: memref<20x128xf32, #tpu.memory_space<vmem>>) attributes {dimension_semantics = [], scalar_prefetch = 0 : i64, scratch_operands = 0 : i64, tpu.core_type = #tpu.core_type<tc>} {
    %c0 = arith.constant 0 : index
    %c0_0 = arith.constant 0 : index
    %0 = vector.load %arg0[%c0, %c0_0] : memref<160x8xf32, #tpu.memory_space<vmem>>, vector<160x8xf32>
    %c0_1 = arith.constant 0 : index
    %c0_2 = arith.constant 0 : index
    %1 = vector.load %arg1[%c0_1, %c0_2] : memref<160x8xf32, #tpu.memory_space<vmem>>, vector<160x8xf32>
    %c0_3 = arith.constant 0 : index
    %c0_4 = arith.constant 0 : index
    %2 = vector.load %arg2[%c0_3, %c0_4] : memref<8x128xf32, #tpu.memory_space<vmem>>, vector<8x128xf32>
    %cst = arith.constant dense<0.000000e+00> : vector<160x128xf32>
    %3 = tpu.matmul %0, %2, %cst {dimension_numbers = #tpu.dot_dimension_numbers<[1], [0], [0], [1], [0, 0, 1, 1], [], []>} : vector<160x8xf32>, vector<8x128xf32>, vector<160x128xf32> -> vector<160x128xf32>
    %c0_5 = arith.constant 0 : index
    %c0_6 = arith.constant 0 : index
    %4 = vector.load %arg3[%c0_5, %c0_6] : memref<1x128xf32, #tpu.memory_space<vmem>>, vector<1x128xf32>
    %5 = vector.broadcast %4 : vector<1x128xf32> to vector<160x128xf32>
    %6 = arith.addf %3, %5 : vector<160x128xf32>
    %7 = math.tanh %6 : vector<160x128xf32>
    %c0_7 = arith.constant 0 : index
    %c0_8 = arith.constant 0 : index
    %8 = vector.load %arg4[%c0_7, %c0_8] : memref<128x1xf32, #tpu.memory_space<vmem>>, vector<128x1xf32>
    %cst_9 = arith.constant dense<0.000000e+00> : vector<160x1xf32>
    %9 = tpu.matmul %7, %8, %cst_9 {dimension_numbers = #tpu.dot_dimension_numbers<[1], [0], [0], [1], [0, 0, 1, 1], [], []>} : vector<160x128xf32>, vector<128x1xf32>, vector<160x1xf32> -> vector<160x1xf32>
    %cst_10 = arith.constant dense<0xFF800000> : vector<160xf32>
    %10 = vector.multi_reduction <maximumf>, %1, %cst_10 [1] : vector<160x8xf32> to vector<160xf32>
    %11 = vector.shape_cast %10 : vector<160xf32> to vector<160x1xf32>
    %cst_11 = arith.constant 0.000000e+00 : f32
    %12 = vector.broadcast %cst_11 : f32 to vector<160x1xf32>
    %13 = arith.cmpf ogt, %11, %12 : vector<160x1xf32>
    %cst_12 = arith.constant -1.000000e+30 : f32
    %14 = vector.broadcast %cst_12 : f32 to vector<160x1xf32>
    %15 = arith.select %13, %9, %14 : vector<160x1xi1>, vector<160x1xf32>
    %16 = vector.shape_cast %15 : vector<160x1xf32> to vector<1x160x1xf32>
    %cst_13 = arith.constant dense<0xFF800000> : vector<1xf32>
    %17 = vector.multi_reduction <maximumf>, %16, %cst_13 [1, 2] : vector<1x160x1xf32> to vector<1xf32>
    %18 = vector.shape_cast %17 : vector<1xf32> to vector<1x1x1xf32>
    %19 = vector.extract %18[0, 0, 0] : f32 from vector<1x1x1xf32>
    %20 = vector.broadcast %19 : f32 to vector<160x1xf32>
    %21 = arith.subf %15, %20 : vector<160x1xf32>
    %22 = math.exp %21 : vector<160x1xf32>
    %23 = tpu.iota {dimensions = array<i32: 0>} : vector<20x160xi32>
    %24 = arith.sitofp %23 : vector<20x160xi32> to vector<20x160xf32>
    %25 = tpu.iota {dimensions = array<i32: 1>} : vector<20x160xi32>
    %26 = arith.sitofp %25 : vector<20x160xi32> to vector<20x160xf32>
    %cst_14 = arith.constant 8.000000e+00 : f32
    %27 = vector.broadcast %cst_14 : f32 to vector<20x160xf32>
    %28 = arith.mulf %24, %27 : vector<20x160xf32>
    %29 = arith.cmpf oge, %26, %28 : vector<20x160xf32>
    %cst_15 = arith.constant 8.000000e+00 : f32
    %30 = vector.broadcast %cst_15 : f32 to vector<20x160xf32>
    %31 = arith.addf %28, %30 : vector<20x160xf32>
    %32 = arith.cmpf olt, %26, %31 : vector<20x160xf32>
    %33 = arith.andi %29, %32 : vector<20x160xi1>
    %34 = arith.extui %33 : vector<20x160xi1> to vector<20x160xi32>
    %35 = arith.sitofp %34 : vector<20x160xi32> to vector<20x160xf32>
    %36 = tpu.iota {dimensions = array<i32: 0>} : vector<160x20xi32>
    %37 = arith.sitofp %36 : vector<160x20xi32> to vector<160x20xf32>
    %38 = tpu.iota {dimensions = array<i32: 1>} : vector<160x20xi32>
    %39 = arith.sitofp %38 : vector<160x20xi32> to vector<160x20xf32>
    %cst_16 = arith.constant 8.000000e+00 : f32
    %40 = vector.broadcast %cst_16 : f32 to vector<160x20xf32>
    %41 = arith.mulf %39, %40 : vector<160x20xf32>
    %42 = arith.cmpf oge, %37, %41 : vector<160x20xf32>
    %cst_17 = arith.constant 8.000000e+00 : f32
    %43 = vector.broadcast %cst_17 : f32 to vector<160x20xf32>
    %44 = arith.addf %41, %43 : vector<160x20xf32>
    %45 = arith.cmpf olt, %37, %44 : vector<160x20xf32>
    %46 = arith.andi %42, %45 : vector<160x20xi1>
    %47 = arith.extui %46 : vector<160x20xi1> to vector<160x20xi32>
    %48 = arith.sitofp %47 : vector<160x20xi32> to vector<160x20xf32>
    %cst_18 = arith.constant dense<0.000000e+00> : vector<20x1xf32>
    %49 = tpu.matmul %35, %22, %cst_18 {dimension_numbers = #tpu.dot_dimension_numbers<[1], [0], [0], [1], [0, 0, 1, 1], [], []>} : vector<20x160xf32>, vector<160x1xf32>, vector<20x1xf32> -> vector<20x1xf32>
    %50 = vector.broadcast %22 : vector<160x1xf32> to vector<160x128xf32>
    %51 = arith.mulf %50, %7 : vector<160x128xf32>
    %cst_19 = arith.constant dense<0.000000e+00> : vector<20x128xf32>
    %52 = tpu.matmul %35, %51, %cst_19 {dimension_numbers = #tpu.dot_dimension_numbers<[1], [0], [0], [1], [0, 0, 1, 1], [], []>} : vector<20x160xf32>, vector<160x128xf32>, vector<20x128xf32> -> vector<20x128xf32>
    %cst_20 = arith.constant 1.000000e-30 : f32
    %53 = vector.broadcast %cst_20 : f32 to vector<20x1xf32>
    %54 = arith.maximumf %49, %53 : vector<20x1xf32>
    %55 = vector.broadcast %54 : vector<20x1xf32> to vector<20x128xf32>
    %56 = arith.divf %52, %55 : vector<20x128xf32>
    %c0_21 = arith.constant 0 : index
    %c0_22 = arith.constant 0 : index
    %57 = vector.load %arg16[%c0_21, %c0_22] : memref<20x128xf32, #tpu.memory_space<vmem>>, vector<20x128xf32>
    tpu.vector_store %arg16[%c0_21, %c0_22], %56 {strides = array<i32>} : memref<20x128xf32, #tpu.memory_space<vmem>>, vector<20x128xf32>,
    %c0_23 = arith.constant 0 : index
    %c0_24 = arith.constant 0 : index
    %58 = vector.load %arg5[%c0_23, %c0_24] : memref<128x8xf32, #tpu.memory_space<vmem>>, vector<128x8xf32>
    %cst_25 = arith.constant dense<0.000000e+00> : vector<20x8xf32>
    %59 = tpu.matmul %56, %58, %cst_25 {dimension_numbers = #tpu.dot_dimension_numbers<[1], [0], [0], [1], [0, 0, 1, 1], [], []>} : vector<20x128xf32>, vector<128x8xf32>, vector<20x8xf32> -> vector<20x8xf32>
    %c0_26 = arith.constant 0 : index
    %c0_27 = arith.constant 0 : index
    %60 = vector.load %arg6[%c0_26, %c0_27] : memref<1x8xf32, #tpu.memory_space<vmem>>, vector<1x8xf32>
    %61 = vector.broadcast %60 : vector<1x8xf32> to vector<20x8xf32>
    %62 = arith.addf %59, %61 : vector<20x8xf32>
    %cst_28 = arith.constant dense<0.000000e+00> : vector<160x8xf32>
    %63 = tpu.matmul %48, %62, %cst_28 {dimension_numbers = #tpu.dot_dimension_numbers<[1], [0], [0], [1], [0, 0, 1, 1], [], []>} : vector<160x20xf32>, vector<20x8xf32>, vector<160x8xf32> -> vector<160x8xf32>
    %64 = arith.subf %0, %63 : vector<160x8xf32>
    %65 = arith.mulf %64, %1 : vector<160x8xf32>
    %66 = arith.mulf %65, %65 : vector<160x8xf32>
    %67 = vector.shape_cast %66 : vector<160x8xf32> to vector<1x160x8xf32>
    %cst_29 = arith.constant dense<0.000000e+00> : vector<1xf32>
    %68 = vector.multi_reduction <add>, %67, %cst_29 [1, 2] : vector<1x160x8xf32> to vector<1xf32>
    %69 = vector.shape_cast %68 : vector<1xf32> to vector<1x1x1xf32>
    %70 = vector.extract %69[0, 0, 0] : f32 from vector<1x1x1xf32>
    %71 = vector.shape_cast %1 : vector<160x8xf32> to vector<1x160x8xf32>
    %cst_30 = arith.constant dense<0.000000e+00> : vector<1xf32>
    %72 = vector.multi_reduction <add>, %71, %cst_30 [1, 2] : vector<1x160x8xf32> to vector<1xf32>
    %73 = vector.shape_cast %72 : vector<1xf32> to vector<1x1x1xf32>
    %74 = vector.extract %73[0, 0, 0] : f32 from vector<1x1x1xf32>
    %75 = arith.divf %70, %74 : f32
    %cst_31 = arith.constant 5.000000e-01 : f32
    %76 = arith.mulf %75, %cst_31 : f32
    %c0_32 = arith.constant 0 : index
    %c0_33 = arith.constant 0 : index
    %77 = vector.load %arg9[%c0_32, %c0_33] : memref<20x1xi32, #tpu.memory_space<vmem>>, vector<20x1xi32>
    %78 = tpu.iota {dimensions = array<i32: 1>} : vector<20x20xi32>
    %79 = vector.broadcast %77 : vector<20x1xi32> to vector<20x20xi32>
    %80 = arith.cmpi eq, %78, %79 : vector<20x20xi32>
    %81 = arith.extui %80 : vector<20x20xi1> to vector<20x20xi32>
    %82 = arith.sitofp %81 : vector<20x20xi32> to vector<20x20xf32>
    %c0_34 = arith.constant 0 : index
    %c0_35 = arith.constant 0 : index
    %83 = vector.load %arg7[%c0_34, %c0_35] : memref<20x16xf32, #tpu.memory_space<vmem>>, vector<20x16xf32>
    %cst_36 = arith.constant dense<0.000000e+00> : vector<20x16xf32>
    %84 = tpu.matmul %82, %83, %cst_36 {dimension_numbers = #tpu.dot_dimension_numbers<[1], [0], [0], [1], [0, 0, 1, 1], [], []>} : vector<20x20xf32>, vector<20x16xf32>, vector<20x16xf32> -> vector<20x16xf32>
    %c0_37 = arith.constant 0 : index
    %c0_38 = arith.constant 0 : index
    %85 = vector.load %arg10[%c0_37, %c0_38] : memref<1x20xi32, #tpu.memory_space<vmem>>, vector<1x20xi32>
    %86 = tpu.iota {dimensions = array<i32: 0>} : vector<20x20xi32>
    %87 = vector.broadcast %85 : vector<1x20xi32> to vector<20x20xi32>
    %88 = arith.cmpi eq, %86, %87 : vector<20x20xi32>
    %89 = arith.extui %88 : vector<20x20xi1> to vector<20x20xi32>
    %90 = arith.sitofp %89 : vector<20x20xi32> to vector<20x20xf32>
    %cst_39 = arith.constant dense<0xFF800000> : vector<20xf32>
    %91 = vector.multi_reduction <maximumf>, %90, %cst_39 [1] : vector<20x20xf32> to vector<20xf32>
    %92 = vector.shape_cast %91 : vector<20xf32> to vector<20x1xf32>
    %93 = tpu.iota {dimensions = array<i32: 0>} : vector<20x16xi32>
    %94 = tpu.iota {dimensions = array<i32: 1>} : vector<20x16xi32>
    %95 = arith.cmpi eq, %93, %94 : vector<20x16xi32>
    %cst_40 = arith.constant 0.000000e+00 : f32
    %96 = vector.broadcast %cst_40 : f32 to vector<20x1xf32>
    %97 = arith.cmpf ogt, %92, %96 : vector<20x1xf32>
    %98 = vector.broadcast %97 : vector<20x1xi1> to vector<20x16xi1>
    %99 = arith.andi %95, %98 : vector<20x16xi1>
    %cst_41 = arith.constant -1.000000e+30 : f32
    %100 = vector.broadcast %cst_41 : f32 to vector<20x16xf32>
    %101 = arith.select %99, %100, %84 : vector<20x16xi1>, vector<20x16xf32>
    %c0_42 = arith.constant 0 : index
    %c0_43 = arith.constant 0 : index
    %102 = vector.load %arg11[%c0_42, %c0_43] : memref<20x16xf32, #tpu.memory_space<vmem>>, vector<20x16xf32>
    %103 = arith.addf %101, %102 : vector<20x16xf32>
    %cst_44 = arith.constant 1.000000e+00 : f32
    %104 = vector.broadcast %cst_44 : f32 to vector<20x16xf32>
    %105 = arith.divf %103, %104 : vector<20x16xf32>
    %cst_45 = arith.constant dense<0xFF800000> : vector<20xf32>
    %106 = vector.multi_reduction <maximumf>, %105, %cst_45 [1] : vector<20x16xf32> to vector<20xf32>
    %107 = vector.shape_cast %106 : vector<20xf32> to vector<20x1xf32>
    %108 = vector.broadcast %107 : vector<20x1xf32> to vector<20x16xf32>
    %109 = arith.subf %105, %108 : vector<20x16xf32>
    %110 = math.exp %109 : vector<20x16xf32>
    %cst_46 = arith.constant dense<0.000000e+00> : vector<20xf32>
    %111 = vector.multi_reduction <add>, %110, %cst_46 [1] : vector<20x16xf32> to vector<20xf32>
    %112 = vector.shape_cast %111 : vector<20xf32> to vector<20x1xf32>
    %113 = vector.broadcast %112 : vector<20x1xf32> to vector<20x16xf32>
    %114 = arith.divf %110, %113 : vector<20x16xf32>
    %c0_47 = arith.constant 0 : index
    %c0_48 = arith.constant 0 : index
    %115 = vector.load %arg8[%c0_47, %c0_48] : memref<16x128xf32, #tpu.memory_space<vmem>>, vector<16x128xf32>
    %cst_49 = arith.constant dense<0.000000e+00> : vector<20x128xf32>
    %116 = tpu.matmul %114, %115, %cst_49 {dimension_numbers = #tpu.dot_dimension_numbers<[1], [0], [0], [1], [0, 0, 1, 1], [], []>} : vector<20x16xf32>, vector<16x128xf32>, vector<20x128xf32> -> vector<20x128xf32>
    %117 = arith.subf %56, %116 : vector<20x128xf32>
    %118 = arith.mulf %117, %117 : vector<20x128xf32>
    %119 = vector.shape_cast %118 : vector<20x128xf32> to vector<1x20x128xf32>
    %cst_50 = arith.constant dense<0.000000e+00> : vector<1xf32>
    %120 = vector.multi_reduction <add>, %119, %cst_50 [1, 2] : vector<1x20x128xf32> to vector<1xf32>
    %121 = vector.shape_cast %120 : vector<1xf32> to vector<1x1x1xf32>
    %122 = vector.extract %121[0, 0, 0] : f32 from vector<1x1x1xf32>
    %cst_51 = arith.constant 2.560000e+03 : f32
    %123 = arith.divf %122, %cst_51 : f32
    %124 = arith.mulf %114, %114 : vector<20x16xf32>
    %125 = vector.shape_cast %124 : vector<20x16xf32> to vector<1x20x16xf32>
    %cst_52 = arith.constant dense<0.000000e+00> : vector<1xf32>
    %126 = vector.multi_reduction <add>, %125, %cst_52 [1, 2] : vector<1x20x16xf32> to vector<1xf32>
    %127 = vector.shape_cast %126 : vector<1xf32> to vector<1x1x1xf32>
    %128 = vector.extract %127[0, 0, 0] : f32 from vector<1x1x1xf32>
    %cst_53 = arith.constant 3.200000e+02 : f32
    %129 = arith.divf %128, %cst_53 : f32
    %cst_54 = arith.constant 1.000000e-01 : f32
    %130 = arith.mulf %cst_54, %129 : f32
    %131 = arith.addf %123, %130 : f32
    %cst_55 = arith.constant 1.000000e+00 : f32
    %132 = arith.mulf %cst_55, %131 : f32
    %c0_56 = arith.constant 0 : index
    %c0_57 = arith.constant 0 : index
    %133 = vector.load %arg13[%c0_56, %c0_57] : memref<16x4xf32, #tpu.memory_space<vmem>>, vector<16x4xf32>
    %cst_58 = arith.constant dense<0.000000e+00> : vector<20x4xf32>
    %134 = tpu.matmul %114, %133, %cst_58 {dimension_numbers = #tpu.dot_dimension_numbers<[1], [0], [0], [1], [0, 0, 1, 1], [], []>} : vector<20x16xf32>, vector<16x4xf32>, vector<20x4xf32> -> vector<20x4xf32>
    %c0_59 = arith.constant 0 : index
    %c0_60 = arith.constant 0 : index
    %135 = vector.load %arg12[%c0_59, %c0_60] : memref<20x4xf32, #tpu.memory_space<vmem>>, vector<20x4xf32>
    %136 = arith.subf %135, %134 : vector<20x4xf32>
    %137 = arith.mulf %136, %136 : vector<20x4xf32>
    %c0_61 = arith.constant 0 : index
    %c0_62 = arith.constant 0 : index
    %138 = vector.load %arg14[%c0_61, %c0_62] : memref<20x1xf32, #tpu.memory_space<vmem>>, vector<20x1xf32>
    %139 = vector.broadcast %138 : vector<20x1xf32> to vector<20x4xf32>
    %140 = arith.mulf %137, %139 : vector<20x4xf32>
    %141 = vector.shape_cast %140 : vector<20x4xf32> to vector<1x20x4xf32>
    %cst_63 = arith.constant dense<0.000000e+00> : vector<1xf32>
    %142 = vector.multi_reduction <add>, %141, %cst_63 [1, 2] : vector<1x20x4xf32> to vector<1xf32>
    %143 = vector.shape_cast %142 : vector<1xf32> to vector<1x1x1xf32>
    %144 = vector.extract %143[0, 0, 0] : f32 from vector<1x1x1xf32>
    %c0_64 = arith.constant 0 : index
    %c0_65 = arith.constant 0 : index
    %145 = vector.load %arg14[%c0_64, %c0_65] : memref<20x1xf32, #tpu.memory_space<vmem>>, vector<20x1xf32>
    %146 = vector.shape_cast %145 : vector<20x1xf32> to vector<1x20x1xf32>
    %cst_66 = arith.constant dense<0.000000e+00> : vector<1xf32>
    %147 = vector.multi_reduction <add>, %146, %cst_66 [1, 2] : vector<1x20x1xf32> to vector<1xf32>
    %148 = vector.shape_cast %147 : vector<1xf32> to vector<1x1x1xf32>
    %149 = vector.extract %148[0, 0, 0] : f32 from vector<1x1x1xf32>
    %150 = arith.divf %144, %149 : f32
    %cst_67 = arith.constant 3.000000e-01 : f32
    %151 = arith.mulf %150, %cst_67 : f32
    %152 = arith.addf %132, %76 : f32
    %153 = arith.addf %152, %151 : f32
    %154 = vector.broadcast %153 : f32 to vector<1x1xf32>
    %c0_68 = arith.constant 0 : index
    %c0_69 = arith.constant 0 : index
    %155 = vector.load %arg15[%c0_68, %c0_69] : memref<1x1xf32, #tpu.memory_space<vmem>>, vector<1x1xf32>
    tpu.vector_store %arg15[%c0_68, %c0_69], %154 {strides = array<i32>} : memref<1x1xf32, #tpu.memory_space<vmem>>, vector<1x1xf32>,
    return
  }
}

</mosaic_0001>

<llo_original>
// kernel: tpu_custom_call.1
$region0: #{tpu_custom_call.1}
  #allocation0 [shape = 'u32[]', space=smem, size = 0x4, offset = 0x4, fixed_abs, tag = 'smem constant byte address 0x4 - core index']
  #allocation1 [shape = 'u32[144,128]{1,0:T(1,128)}', space=vmem, size = 0x12000, scoped, tag = 'internal scratch']
  %s0 = inlined_call_operand.vmem [shape: f32[160,8], index: 0, kind: input, shape index: {}]
  %s1 = inlined_call_operand.vmem [shape: f32[160,8], index: 1, kind: input, shape index: {}]
  %s2 = inlined_call_operand.vmem [shape: f32[8,128], index: 2, kind: input, shape index: {}]
  %s3 = inlined_call_operand.vmem [shape: f32[1,128], index: 3, kind: input, shape index: {}]
  %s4 = inlined_call_operand.vmem [shape: f32[128,1], index: 4, kind: input, shape index: {}]
  %s5 = inlined_call_operand.vmem [shape: f32[128,8], index: 5, kind: input, shape index: {}]
  %s6 = inlined_call_operand.vmem [shape: f32[1,8], index: 6, kind: input, shape index: {}]
  %s7 = inlined_call_operand.vmem [shape: f32[20,16], index: 7, kind: input, shape index: {}]
  %s8 = inlined_call_operand.vmem [shape: f32[16,128], index: 8, kind: input, shape index: {}]
  %s9 = inlined_call_operand.vmem [shape: s32[20,1], index: 9, kind: input, shape index: {}]
  %s10 = inlined_call_operand.vmem [shape: s32[1,20], index: 10, kind: input, shape index: {}]
  %s11 = inlined_call_operand.vmem [shape: f32[20,16], index: 11, kind: input, shape index: {}]
  %s12 = inlined_call_operand.vmem [shape: f32[20,4], index: 12, kind: input, shape index: {}]
  %s13 = inlined_call_operand.vmem [shape: f32[16,4], index: 13, kind: input, shape index: {}]
  %s14 = inlined_call_operand.vmem [shape: f32[20,1], index: 14, kind: input, shape index: {}]
  %s15 = inlined_call_operand.hbm [shape: f32[1,1], index: 15, kind: output, shape index: {0}]
  %s16 = inlined_call_operand.hbm [shape: f32[20,128], index: 16, kind: output, shape index: {1}]
  %17 = xla_tuple %s15, %s16
  %s18 = sld [smem:[#allocation0]]
  $region78: #{tpu_custom_call.1} parent=0
    _
  %s20 = ssub.s32 1, %s18
  %s21 = scalar_select 0, %s20, %s18
  $region1: #{tpu_custom_call.1} parent=0
    #allocation2 [shape = 'u8[512]{0}', space=vmem, size = 0x400, scoped, tag = 'output window, operand 0, single buffered']
    #allocation3 [shape = 's32[1]{0}', space=sflag, size = 0x4, scoped, tag = 'scoped memory for tpu_custom_call.1']
    #allocation4 [shape = 'u8[12288]{0}', space=vmem, size = 0x3000, scoped, tag = 'output window, operand 1, single buffered']
    #allocation5 [shape = 's32[1]{0}', space=sflag, size = 0x4, scoped, tag = 'scoped memory for tpu_custom_call.1']
    %22 = vsyncpa [#allocation3], 0
    %23 = vsyncpa [#allocation5], 0
    // Predicated region
    $region2: #{tpu_custom_call.1} parent=1 // pred_check
      _
    $region3: #{tpu_custom_call.1} parent=1 // pred_check_branch
      %25 = sbr.rel (0) target = $region5
    $region4: #{tpu_custom_call.1} parent=1 // pred_region
      _
    $region5: #{tpu_custom_call.1} parent=1 // pred_fallthru
      _
    // Predicated region
    $region6: #{tpu_custom_call.1} parent=1 // pred_check
      _
    $region7: #{tpu_custom_call.1} parent=1 // pred_check_branch
      %27 = sbr.rel (0) target = $region9
    $region8: #{tpu_custom_call.1} parent=1 // pred_region
      _
    $region9: #{tpu_custom_call.1} parent=1 // pred_fallthru
      _
    // Predicated region
    $region10: #{tpu_custom_call.1} parent=1 // pred_check
      _
    $region11: #{tpu_custom_call.1} parent=1 // pred_check_branch
      %29 = sbr.rel (0) target = $region13
    $region12: #{tpu_custom_call.1} parent=1 // pred_region
      _
    $region13: #{tpu_custom_call.1} parent=1 // pred_fallthru
      _
    // Predicated region
    $region14: #{tpu_custom_call.1} parent=1 // pred_check
      _
    $region15: #{tpu_custom_call.1} parent=1 // pred_check_branch
      %31 = sbr.rel (0) target = $region17
    $region16: #{tpu_custom_call.1} parent=1 // pred_region
      _
    $region17: #{tpu_custom_call.1} parent=1 // pred_fallthru
      _
    // Predicated region
    $region18: #{tpu_custom_call.1} parent=1 // pred_check
      _
    $region19: #{tpu_custom_call.1} parent=1 // pred_check_branch
      %33 = sbr.rel (0) target = $region21
    $region20: #{tpu_custom_call.1} parent=1 // pred_region
      _
    $region21: #{tpu_custom_call.1} parent=1 // pred_fallthru
      _
    // Predicated region
    $region22: #{tpu_custom_call.1} parent=1 // pred_check
      _
    $region23: #{tpu_custom_call.1} parent=1 // pred_check_branch
      %35 = sbr.rel (0) target = $region25
    $region24: #{tpu_custom_call.1} parent=1 // pred_region
      _
    $region25: #{tpu_custom_call.1} parent=1 // pred_fallthru
      _
    // Predicated region
    $region26: #{tpu_custom_call.1} parent=1 // pred_check
      _
    $region27: #{tpu_custom_call.1} parent=1 // pred_check_branch
      %37 = sbr.rel (0) target = $region29
    $region28: #{tpu_custom_call.1} parent=1 // pred_region
      _
    $region29: #{tpu_custom_call.1} parent=1 // pred_fallthru
      _
    // Predicated region
    $region30: #{tpu_custom_call.1} parent=1 // pred_check
      _
    $region31: #{tpu_custom_call.1} parent=1 // pred_check_branch
      %39 = sbr.rel (0) target = $region33
    $region32: #{tpu_custom_call.1} parent=1 // pred_region
      _
    $region33: #{tpu_custom_call.1} parent=1 // pred_fallthru
      _
    // Predicated region
    $region34: #{tpu_custom_call.1} parent=1 // pred_check
      _
    $region35: #{tpu_custom_call.1} parent=1 // pred_check_branch
      %41 = sbr.rel (0) target = $region37
    $region36: #{tpu_custom_call.1} parent=1 // pred_region
      _
    $region37: #{tpu_custom_call.1} parent=1 // pred_fallthru
      _
    // Predicated region
    $region38: #{tpu_custom_call.1} parent=1 // pred_check
      _
    $region39: #{tpu_custom_call.1} parent=1 // pred_check_branch
      %43 = sbr.rel (0) target = $region41
    $region40: #{tpu_custom_call.1} parent=1 // pred_region
      _
    $region41: #{tpu_custom_call.1} parent=1 // pred_fallthru
      _
    // Predicated region
    $region42: #{tpu_custom_call.1} parent=1 // pred_check
      _
    $region43: #{tpu_custom_call.1} parent=1 // pred_check_branch
      %45 = sbr.rel (0) target = $region45
    $region44: #{tpu_custom_call.1} parent=1 // pred_region
      _
    $region45: #{tpu_custom_call.1} parent=1 // pred_fallthru
      _
    // Predicated region
    $region46: #{tpu_custom_call.1} parent=1 // pred_check
      _
    $region47: #{tpu_custom_call.1} parent=1 // pred_check_branch
      %47 = sbr.rel (0) target = $region49
    $region48: #{tpu_custom_call.1} parent=1 // pred_region
      _
    $region49: #{tpu_custom_call.1} parent=1 // pred_fallthru
      _
    // Predicated region
    $region50: #{tpu_custom_call.1} parent=1 // pred_check
      _
    $region51: #{tpu_custom_call.1} parent=1 // pred_check_branch
      %49 = sbr.rel (0) target = $region53
    $region52: #{tpu_custom_call.1} parent=1 // pred_region
      _
    $region53: #{tpu_custom_call.1} parent=1 // pred_fallthru
      _
    // Predicated region
    $region54: #{tpu_custom_call.1} parent=1 // pred_check
      _
    $region55: #{tpu_custom_call.1} parent=1 // pred_check_branch
      %51 = sbr.rel (0) target = $region57
    $region56: #{tpu_custom_call.1} parent=1 // pred_region
      _
    $region57: #{tpu_custom_call.1} parent=1 // pred_fallthru
      _
    // Predicated region
    $region58: #{tpu_custom_call.1} parent=1 // pred_check
      _
    $region59: #{tpu_custom_call.1} parent=1 // pred_check_branch
      %53 = sbr.rel (0) target = $region61
    $region60: #{tpu_custom_call.1} parent=1 // pred_region
      _
    $region61: #{tpu_custom_call.1} parent=1 // pred_fallthru
      _
    %v54 = vld [vmem:[%s0] sm:$0xff]
    %v55 = vld [vmem:[%s0 + $0x8] sm:$0xff]
    %v56 = vld [vmem:[%s0 + $0x10] sm:$0xff]
    %v57 = vld [vmem:[%s0 + $0x18] sm:$0xff]
    %v58 = vld [vmem:[%s0 + $0x20] sm:$0xff]
    %v59 = vld [vmem:[%s0 + $0x28] sm:$0xff]
    %v60 = vld [vmem:[%s0 + $0x30] sm:$0xff]
    %v61 = vld [vmem:[%s0 + $0x38] sm:$0xff]
    %v62 = vld [vmem:[%s0 + $0x40] sm:$0xff]
    %v63 = vld [vmem:[%s0 + $0x48] sm:$0xff]
    %v64 = vld [vmem:[%s0 + $0x50] sm:$0xff]
    %v65 = vld [vmem:[%s0 + $0x58] sm:$0xff]
    %v66 = vld [vmem:[%s0 + $0x60] sm:$0xff]
    %v67 = vld [vmem:[%s0 + $0x68] sm:$0xff]
    %v68 = vld [vmem:[%s0 + $0x70] sm:$0xff]
    %v69 = vld [vmem:[%s0 + $0x78] sm:$0xff]
    %v70 = vld [vmem:[%s0 + $0x80] sm:$0xff]
    %v71 = vld [vmem:[%s0 + $0x88] sm:$0xff]
    %v72 = vld [vmem:[%s0 + $0x90] sm:$0xff]
    %v73 = vld [vmem:[%s0 + $0x98] sm:$0xff]
    %v74 = vld [vmem:[%s1] sm:$0xff]
    %v75 = vld [vmem:[%s1 + $0x8] sm:$0xff]
    %v76 = vld [vmem:[%s1 + $0x10] sm:$0xff]
    %v77 = vld [vmem:[%s1 + $0x18] sm:$0xff]
    %v78 = vld [vmem:[%s1 + $0x20] sm:$0xff]
    %v79 = vld [vmem:[%s1 + $0x28] sm:$0xff]
    %v80 = vld [vmem:[%s1 + $0x30] sm:$0xff]
    %v81 = vld [vmem:[%s1 + $0x38] sm:$0xff]
    %v82 = vld [vmem:[%s1 + $0x40] sm:$0xff]
    %v83 = vld [vmem:[%s1 + $0x48] sm:$0xff]
    %v84 = vld [vmem:[%s1 + $0x50] sm:$0xff]
    %v85 = vld [vmem:[%s1 + $0x58] sm:$0xff]
    %v86 = vld [vmem:[%s1 + $0x60] sm:$0xff]
    %v87 = vld [vmem:[%s1 + $0x68] sm:$0xff]
    %v88 = vld [vmem:[%s1 + $0x70] sm:$0xff]
    %v89 = vld [vmem:[%s1 + $0x78] sm:$0xff]
    %v90 = vld [vmem:[%s1 + $0x80] sm:$0xff]
    %v91 = vld [vmem:[%s1 + $0x88] sm:$0xff]
    %v92 = vld [vmem:[%s1 + $0x90] sm:$0xff]
    %v93 = vld [vmem:[%s1 + $0x98] sm:$0xff]
    %v94 = vld [vmem:[%s2] sm:$0xff]
    %v95 = vld [vmem:[%s3] sm:$0x1]
    %v97 = vlaneseq
    %v98 = vshrl.u32 %v97, 7
    %v99 = vsub.s32 0, %v98
    %v100 = vrot.slane %v95, %v99
    %vm102 = vcmask 64512
    %v104 = vsel %vm102, %v54, 0
    %v107 = vsel %vm102, %v55, 0
    %v110 = vsel %vm102, %v56, 0
    %v113 = vsel %vm102, %v57, 0
    %v116 = vsel %vm102, %v58, 0
    %v119 = vsel %vm102, %v59, 0
    %v122 = vsel %vm102, %v60, 0
    %v125 = vsel %vm102, %v61, 0
    %v128 = vsel %vm102, %v62, 0
    %v131 = vsel %vm102, %v63, 0
    %v134 = vsel %vm102, %v64, 0
    %v137 = vsel %vm102, %v65, 0
    %v140 = vsel %vm102, %v66, 0
    %v143 = vsel %vm102, %v67, 0
    %v146 = vsel %vm102, %v68, 0
    %v149 = vsel %vm102, %v69, 0
    %v152 = vsel %vm102, %v70, 0
    %v155 = vsel %vm102, %v71, 0
    %v158 = vsel %vm102, %v72, 0
    %v161 = vsel %vm102, %v73, 0
    %163 = vmatprep.subr.mxu0 0.0
    %164 = vmatpush1.msra.mxu0 %v94
    %165 = vmatprep.subr.mxu0 0.0
    %166 = vmatpush1.msra.mxu0 0.0
    %167 = vmatprep.subr.mxu0 0.0
    %168 = vmatpush1.msra.mxu0 0.0
    %169 = vmatprep.subr.mxu0 0.0
    %170 = vmatpush1.msra.mxu0 0.0
    %171 = vmatprep.subr.mxu0 0.0
    %172 = vmatpush1.msra.mxu0 0.0
    %173 = vmatprep.subr.mxu0 0.0
    %174 = vmatpush1.msra.mxu0 0.0
    %175 = vmatprep.subr.mxu0 0.0
    %176 = vmatpush1.msra.mxu0 0.0
    %177 = vmatprep.subr.mxu0 0.0
    %178 = vmatpush1.msra.mxu0 0.0
    %179 = vmatprep.subr.mxu0 0.0
    %180 = vmatpush1.msra.mxu0 0.0
    %181 = vmatprep.subr.mxu0 0.0
    %182 = vmatpush1.msra.mxu0 0.0
    %183 = vmatprep.subr.mxu0 0.0
    %184 = vmatpush1.msra.mxu0 0.0
    %185 = vmatprep.subr.mxu0 0.0
    %186 = vmatpush1.msra.mxu0 0.0
    %187 = vmatprep.subr.mxu0 0.0
    %188 = vmatpush1.msra.mxu0 0.0
    %189 = vmatprep.subr.mxu0 0.0
    %190 = vmatpush1.msra.mxu0 0.0
    %191 = vmatprep.subr.mxu0 0.0
    %192 = vmatpush1.msra.mxu0 0.0
    %193 = vmatprep.subr.mxu0 0.0
    %194 = vmatpush1.msra.mxu0 0.0
    %195 = vmatprep.subr.mxu0 0.0
    %196 = vmatpush1.msra.mxu0 0.0
    %197 = vmatprep.subr.mxu0 0.0
    %198 = vmatpush1.msra.mxu0 0.0
    %199 = vmatprep.subr.mxu0 0.0
    %200 = vmatpush1.msra.mxu0 0.0
    %201 = vmatprep.subr.mxu0 0.0
    %202 = vmatpush1.msra.mxu0 0.0
    %203 = vmatprep.subr.mxu0 0.0
    %204 = vmatpush1.msra.mxu0 0.0
    %205 = vmatprep.subr.mxu0 0.0
    %206 = vmatpush1.msra.mxu0 0.0
    %207 = vmatprep.subr.mxu0 0.0
    %208 = vmatpush1.msra.mxu0 0.0
    %209 = vmatprep.subr.mxu0 0.0
    %210 = vmatpush1.msra.mxu0 0.0
    %211 = vmatprep.subr.mxu0 0.0
    %212 = vmatpush1.msra.mxu0 0.0
    %213 = vmatprep.subr.mxu0 0.0
    %214 = vmatpush1.msra.mxu0 0.0
    %215 = vmatprep.subr.mxu0 0.0
    %216 = vmatpush1.msra.mxu0 0.0
    %217 = vmatprep.subr.mxu0 0.0
    %218 = vmatpush1.msra.mxu0 0.0
    %219 = vmatprep.subr.mxu0 0.0
    %220 = vmatpush1.msra.mxu0 0.0
    %221 = vmatprep.subr.mxu0 0.0
    %222 = vmatpush1.msra.mxu0 0.0
    %223 = vmatprep.subr.mxu0 0.0
    %224 = vmatpush1.msra.mxu0 0.0
    %225 = vmatprep.subr.mxu0 0.0
    %226 = vmatpush1.msra.mxu0 0.0
    %227 = vmatprep.mubr.f32.mxu0 0.0
    %228 = vmatmul.mubr.f32.gmra.mrb[0].mxu0 %v104
    %v229 = vpop.f32.mrb[0].mxu0
    %v230 = vadd.f32 %v100, %v229
    %v231 = vpop.f32.mrb[0].mxu0
    %232 = vmatprep.mubr.f32.mxu0 0.0
    %233 = vmatmul.mubr.f32.gmra.mrb[0].mxu0 %v107
    %v234 = vpop.f32.mrb[0].mxu0
    %v235 = vadd.f32 %v100, %v234
    %v236 = vpop.f32.mrb[0].mxu0
    %237 = vmatprep.mubr.f32.mxu0 0.0
    %238 = vmatmul.mubr.f32.gmra.mrb[0].mxu0 %v110
    %v239 = vpop.f32.mrb[0].mxu0
    %v240 = vadd.f32 %v100, %v239
    %v241 = vpop.f32.mrb[0].mxu0
    %242 = vmatprep.mubr.f32.mxu0 0.0
    %243 = vmatmul.mubr.f32.gmra.mrb[0].mxu0 %v113
    %v244 = vpop.f32.mrb[0].mxu0
    %v245 = vadd.f32 %v100, %v244
    %v246 = vpop.f32.mrb[0].mxu0
    %247 = vmatprep.mubr.f32.mxu0 0.0
    %248 = vmatmul.mubr.f32.gmra.mrb[0].mxu0 %v116
    %v249 = vpop.f32.mrb[0].mxu0
    %v250 = vadd.f32 %v100, %v249
    %v251 = vpop.f32.mrb[0].mxu0
    %252 = vmatprep.mubr.f32.mxu0 0.0
    %253 = vmatmul.mubr.f32.gmra.mrb[0].mxu0 %v119
    %v254 = vpop.f32.mrb[0].mxu0
    %v255 = vadd.f32 %v100, %v254
    %v256 = vpop.f32.mrb[0].mxu0
    %257 = vmatprep.mubr.f32.mxu0 0.0
    %258 = vmatmul.mubr.f32.gmra.mrb[0].mxu0 %v122
    %v259 = vpop.f32.mrb[0].mxu0
    %v260 = vadd.f32 %v100, %v259
    %v261 = vpop.f32.mrb[0].mxu0
    %262 = vmatprep.mubr.f32.mxu0 0.0
    %263 = vmatmul.mubr.f32.gmra.mrb[0].mxu0 %v125
    %v264 = vpop.f32.mrb[0].mxu0
    %v265 = vadd.f32 %v100, %v264
    %v266 = vpop.f32.mrb[0].mxu0
    %267 = vmatprep.mubr.f32.mxu0 0.0
    %268 = vmatmul.mubr.f32.gmra.mrb[0].mxu0 %v128
    %v269 = vpop.f32.mrb[0].mxu0
    %v270 = vadd.f32 %v100, %v269
    %v271 = vpop.f32.mrb[0].mxu0
    %272 = vmatprep.mubr.f32.mxu0 0.0
    %273 = vmatmul.mubr.f32.gmra.mrb[0].mxu0 %v131
    %v274 = vpop.f32.mrb[0].mxu0
    %v275 = vadd.f32 %v100, %v274
    %v276 = vpop.f32.mrb[0].mxu0
    %277 = vmatprep.mubr.f32.mxu0 0.0
    %278 = vmatmul.mubr.f32.gmra.mrb[0].mxu0 %v134
    %v279 = vpop.f32.mrb[0].mxu0
    %v280 = vadd.f32 %v100, %v279
    %v281 = vpop.f32.mrb[0].mxu0
    %282 = vmatprep.mubr.f32.mxu0 0.0
    %283 = vmatmul.mubr.f32.gmra.mrb[0].mxu0 %v137
    %v284 = vpop.f32.mrb[0].mxu0
    %v285 = vadd.f32 %v100, %v284
    %v286 = vpop.f32.mrb[0].mxu0
    %287 = vmatprep.mubr.f32.mxu0 0.0
    %288 = vmatmul.mubr.f32.gmra.mrb[0].mxu0 %v140
    %v289 = vpop.f32.mrb[0].mxu0
    %v290 = vadd.f32 %v100, %v289
    %v291 = vpop.f32.mrb[0].mxu0
    %292 = vmatprep.mubr.f32.mxu0 0.0
    %293 = vmatmul.mubr.f32.gmra.mrb[0].mxu0 %v143
    %v294 = vpop.f32.mrb[0].mxu0
    %v295 = vadd.f32 %v100, %v294
    %v296 = vpop.f32.mrb[0].mxu0
    %297 = vmatprep.mubr.f32.mxu0 0.0
    %298 = vmatmul.mubr.f32.gmra.mrb[0].mxu0 %v146
    %v299 = vpop.f32.mrb[0].mxu0
    %v300 = vadd.f32 %v100, %v299
    %v301 = vpop.f32.mrb[0].mxu0
    %302 = vmatprep.mubr.f32.mxu0 0.0
    %303 = vmatmul.mubr.f32.gmra.mrb[0].mxu0 %v149
    %v304 = vpop.f32.mrb[0].mxu0
    %v305 = vadd.f32 %v100, %v304
    %v306 = vpop.f32.mrb[0].mxu0
    %307 = vmatprep.mubr.f32.mxu0 0.0
    %308 = vmatmul.mubr.f32.gmra.mrb[0].mxu0 %v152
    %v309 = vpop.f32.mrb[0].mxu0
    %v310 = vadd.f32 %v100, %v309
    %v311 = vpop.f32.mrb[0].mxu0
    %312 = vmatprep.mubr.f32.mxu0 0.0
    %313 = vmatmul.mubr.f32.gmra.mrb[0].mxu0 %v155
    %v314 = vpop.f32.mrb[0].mxu0
    %v315 = vadd.f32 %v100, %v314
    %v316 = vpop.f32.mrb[0].mxu0
    %317 = vmatprep.mubr.f32.mxu0 0.0
    %318 = vmatmul.mubr.f32.gmra.mrb[0].mxu0 %v158
    %v319 = vpop.f32.mrb[0].mxu0
    %v320 = vadd.f32 %v100, %v319
    %v321 = vpop.f32.mrb[0].mxu0
    %322 = vmatprep.mubr.f32.mxu0 0.0
    %323 = vmatmul.mubr.f32.gmra.mrb[0].mxu0 %v161
    %v324 = vpop.f32.mrb[0].mxu0
    %v325 = vadd.f32 %v100, %v324
    %v326 = vpop.f32.mrb[0].mxu0
    %327 = vdwg.mxu0
    %v328 = vtanh.pop %v230
    %v329 = vtanh.pop %v235
    %v330 = vtanh.pop %v240
    %v331 = vtanh.pop %v245
    %v332 = vtanh.pop %v250
    %v333 = vtanh.pop %v255
    %v334 = vtanh.pop %v260
    %v335 = vtanh.pop %v265
    %v336 = vtanh.pop %v270
    %v337 = vtanh.pop %v275
    %v338 = vtanh.pop %v280
    %v339 = vtanh.pop %v285
    %v340 = vtanh.pop %v290
    %v341 = vtanh.pop %v295
    %v342 = vtanh.pop %v300
    %v343 = vtanh.pop %v305
    %v344 = vtanh.pop %v310
    %v345 = vtanh.pop %v315
    %v346 = vtanh.pop %v320
    %v347 = vtanh.pop %v325
    %v348 = vld [vmem:[%s4] sm:$0xff]
    %v349 = vld [vmem:[%s4 + $0x8] sm:$0xff]
    %v350 = vld [vmem:[%s4 + $0x10] sm:$0xff]
    %v351 = vld [vmem:[%s4 + $0x18] sm:$0xff]
    %v352 = vld [vmem:[%s4 + $0x20] sm:$0xff]
    %v353 = vld [vmem:[%s4 + $0x28] sm:$0xff]
    %v354 = vld [vmem:[%s4 + $0x30] sm:$0xff]
    %v355 = vld [vmem:[%s4 + $0x38] sm:$0xff]
    %v356 = vld [vmem:[%s4 + $0x40] sm:$0xff]
    %v357 = vld [vmem:[%s4 + $0x48] sm:$0xff]
    %v358 = vld [vmem:[%s4 + $0x50] sm:$0xff]
    %v359 = vld [vmem:[%s4 + $0x58] sm:$0xff]
    %v360 = vld [vmem:[%s4 + $0x60] sm:$0xff]
    %v361 = vld [vmem:[%s4 + $0x68] sm:$0xff]
    %v362 = vld [vmem:[%s4 + $0x70] sm:$0xff]
    %v363 = vld [vmem:[%s4 + $0x78] sm:$0xff]
    %364 = vmatprep.subr.mxu0 0.0
    %365 = vmatpush1.msra.mxu0 %v348
    %366 = vmatprep.subr.mxu0 0.0
    %367 = vmatpush1.msra.mxu0 %v349
    %368 = vmatprep.subr.mxu0 0.0
    %369 = vmatpush1.msra.mxu0 %v350
    %370 = vmatprep.subr.mxu0 0.0
    %371 = vmatpush1.msra.mxu0 %v351
    %372 = vmatprep.subr.mxu0 0.0
    %373 = vmatpush1.msra.mxu0 %v352
    %374 = vmatprep.subr.mxu0 0.0
    %375 = vmatpush1.msra.mxu0 %v353
    %376 = vmatprep.subr.mxu0 0.0
    %377 = vmatpush1.msra.mxu0 %v354
    %378 = vmatprep.subr.mxu0 0.0
    %379 = vmatpush1.msra.mxu0 %v355
    %380 = vmatprep.subr.mxu0 0.0
    %381 = vmatpush1.msra.mxu0 %v356
    %382 = vmatprep.subr.mxu0 0.0
    %383 = vmatpush1.msra.mxu0 %v357
    %384 = vmatprep.subr.mxu0 0.0
    %385 = vmatpush1.msra.mxu0 %v358
    %386 = vmatprep.subr.mxu0 0.0
    %387 = vmatpush1.msra.mxu0 %v359
    %388 = vmatprep.subr.mxu0 0.0
    %389 = vmatpush1.msra.mxu0 %v360
    %390 = vmatprep.subr.mxu0 0.0
    %391 = vmatpush1.msra.mxu0 %v361
    %392 = vmatprep.subr.mxu0 0.0
    %393 = vmatpush1.msra.mxu0 %v362
    %394 = vmatprep.subr.mxu0 0.0
    %395 = vmatpush1.msra.mxu0 %v363
    %396 = vmatprep.subr.mxu0 0.0
    %397 = vmatpush1.msra.mxu0 0.0
    %398 = vmatprep.subr.mxu0 0.0
    %399 = vmatpush1.msra.mxu0 0.0
    %400 = vmatprep.subr.mxu0 0.0
    %401 = vmatpush1.msra.mxu0 0.0
    %402 = vmatprep.subr.mxu0 0.0
    %403 = vmatpush1.msra.mxu0 0.0
    %404 = vmatprep.subr.mxu0 0.0
    %405 = vmatpush1.msra.mxu0 0.0
    %406 = vmatprep.subr.mxu0 0.0
    %407 = vmatpush1.msra.mxu0 0.0
    %408 = vmatprep.subr.mxu0 0.0
    %409 = vmatpush1.msra.mxu0 0.0
    %410 = vmatprep.subr.mxu0 0.0
    %411 = vmatpush1.msra.mxu0 0.0
    %412 = vmatprep.subr.mxu0 0.0
    %413 = vmatpush1.msra.mxu0 0.0
    %414 = vmatprep.subr.mxu0 0.0
    %415 = vmatpush1.msra.mxu0 0.0
    %416 = vmatprep.subr.mxu0 0.0
    %417 = vmatpush1.msra.mxu0 0.0
    %418 = vmatprep.subr.mxu0 0.0
    %419 = vmatpush1.msra.mxu0 0.0
    %420 = vmatprep.subr.mxu0 0.0
    %421 = vmatpush1.msra.mxu0 0.0
    %422 = vmatprep.subr.mxu0 0.0
    %423 = vmatpush1.msra.mxu0 0.0
    %424 = vmatprep.subr.mxu0 0.0
    %425 = vmatpush1.msra.mxu0 0.0
    %426 = vmatprep.subr.mxu0 0.0
    %427 = vmatpush1.msra.mxu0 0.0
    %428 = vmatprep.mubr.f32.mxu0 0.0
    %429 = vmatmul.mubr.f32.gmra.mrb[0].mxu0 %v328
    %v430 = vpop.f32.mrb[0].mxu0
    %v431 = vadd.f32 0.0, %v430
    %v432 = vpop.f32.mrb[0].mxu0
    %433 = vmatprep.mubr.f32.mxu0 0.0
    %434 = vmatmul.mubr.f32.gmra.mrb[0].mxu0 %v329
    %v435 = vpop.f32.mrb[0].mxu0
    %v436 = vadd.f32 0.0, %v435
    %v437 = vpop.f32.mrb[0].mxu0
    %438 = vmatprep.mubr.f32.mxu0 0.0
    %439 = vmatmul.mubr.f32.gmra.mrb[0].mxu0 %v330
    %v440 = vpop.f32.mrb[0].mxu0
    %v441 = vadd.f32 0.0, %v440
    %v442 = vpop.f32.mrb[0].mxu0
    %443 = vmatprep.mubr.f32.mxu0 0.0
    %444 = vmatmul.mubr.f32.gmra.mrb[0].mxu0 %v331
    %v445 = vpop.f32.mrb[0].mxu0
    %v446 = vadd.f32 0.0, %v445
    %v447 = vpop.f32.mrb[0].mxu0
    %448 = vmatprep.mubr.f32.mxu0 0.0
    %449 = vmatmul.mubr.f32.gmra.mrb[0].mxu0 %v332
    %v450 = vpop.f32.mrb[0].mxu0
    %v451 = vadd.f32 0.0, %v450
    %v452 = vpop.f32.mrb[0].mxu0
    %453 = vmatprep.mubr.f32.mxu0 0.0
    %454 = vmatmul.mubr.f32.gmra.mrb[0].mxu0 %v333
    %v455 = vpop.f32.mrb[0].mxu0
    %v456 = vadd.f32 0.0, %v455
    %v457 = vpop.f32.mrb[0].mxu0
    %458 = vmatprep.mubr.f32.mxu0 0.0
    %459 = vmatmul.mubr.f32.gmra.mrb[0].mxu0 %v334
    %v460 = vpop.f32.mrb[0].mxu0
    %v461 = vadd.f32 0.0, %v460
    %v462 = vpop.f32.mrb[0].mxu0
    %463 = vmatprep.mubr.f32.mxu0 0.0
    %464 = vmatmul.mubr.f32.gmra.mrb[0].mxu0 %v335
    %v465 = vpop.f32.mrb[0].mxu0
    %v466 = vadd.f32 0.0, %v465
    %v467 = vpop.f32.mrb[0].mxu0
    %468 = vmatprep.mubr.f32.mxu0 0.0
    %469 = vmatmul.mubr.f32.gmra.mrb[0].mxu0 %v336
    %v470 = vpop.f32.mrb[0].mxu0
    %v471 = vadd.f32 0.0, %v470
    %v472 = vpop.f32.mrb[0].mxu0
    %473 = vmatprep.mubr.f32.mxu0 0.0
    %474 = vmatmul.mubr.f32.gmra.mrb[0].mxu0 %v337
    %v475 = vpop.f32.mrb[0].mxu0
    %v476 = vadd.f32 0.0, %v475
    %v477 = vpop.f32.mrb[0].mxu0
    %478 = vmatprep.mubr.f32.mxu0 0.0
    %479 = vmatmul.mubr.f32.gmra.mrb[0].mxu0 %v338
    %v480 = vpop.f32.mrb[0].mxu0
    %v481 = vadd.f32 0.0, %v480
    %v482 = vpop.f32.mrb[0].mxu0
    %483 = vmatprep.mubr.f32.mxu0 0.0
    %484 = vmatmul.mubr.f32.gmra.mrb[0].mxu0 %v339
    %v485 = vpop.f32.mrb[0].mxu0
    %v486 = vadd.f32 0.0, %v485
    %v487 = vpop.f32.mrb[0].mxu0
    %488 = vmatprep.mubr.f32.mxu0 0.0
    %489 = vmatmul.mubr.f32.gmra.mrb[0].mxu0 %v340
    %v490 = vpop.f32.mrb[0].mxu0
    %v491 = vadd.f32 0.0, %v490
    %v492 = vpop.f32.mrb[0].mxu0
    %493 = vmatprep.mubr.f32.mxu0 0.0
    %494 = vmatmul.mubr.f32.gmra.mrb[0].mxu0 %v341
    %v495 = vpop.f32.mrb[0].mxu0
    %v496 = vadd.f32 0.0, %v495
    %v497 = vpop.f32.mrb[0].mxu0
    %498 = vmatprep.mubr.f32.mxu0 0.0
    %499 = vmatmul.mubr.f32.gmra.mrb[0].mxu0 %v342
    %v500 = vpop.f32.mrb[0].mxu0
    %v501 = vadd.f32 0.0, %v500
    %v502 = vpop.f32.mrb[0].mxu0
    %503 = vmatprep.mubr.f32.mxu0 0.0
    %504 = vmatmul.mubr.f32.gmra.mrb[0].mxu0 %v343
    %v505 = vpop.f32.mrb[0].mxu0
    %v506 = vadd.f32 0.0, %v505
    %v507 = vpop.f32.mrb[0].mxu0
    %508 = vmatprep.mubr.f32.mxu0 0.0
    %509 = vmatmul.mubr.f32.gmra.mrb[0].mxu0 %v344
    %v510 = vpop.f32.mrb[0].mxu0
    %v511 = vadd.f32 0.0, %v510
    %v512 = vpop.f32.mrb[0].mxu0
    %513 = vmatprep.mubr.f32.mxu0 0.0
    %514 = vmatmul.mubr.f32.gmra.mrb[0].mxu0 %v345
    %v515 = vpop.f32.mrb[0].mxu0
    %v516 = vadd.f32 0.0, %v515
    %v517 = vpop.f32.mrb[0].mxu0
    %518 = vmatprep.mubr.f32.mxu0 0.0
    %519 = vmatmul.mubr.f32.gmra.mrb[0].mxu0 %v346
    %v520 = vpop.f32.mrb[0].mxu0
    %v521 = vadd.f32 0.0, %v520
    %v522 = vpop.f32.mrb[0].mxu0
    %523 = vmatprep.mubr.f32.mxu0 0.0
    %524 = vmatmul.mubr.f32.gmra.mrb[0].mxu0 %v347
    %v525 = vpop.f32.mrb[0].mxu0
    %v526 = vadd.f32 0.0, %v525
    %v527 = vpop.f32.mrb[0].mxu0
    %528 = vdwg.mxu0
    %v529 = vsel %vm102, %v74, -inf
    %530 = vmax.xlane.f32.xlu0 %v529
    %v531 = vpop.xlane.xlu0 %530
    %v532 = vsel %vm102, %v75, -inf
    %533 = vmax.xlane.f32.xlu0 %v532
    %v534 = vpop.xlane.xlu0 %533
    %v535 = vsel %vm102, %v76, -inf
    %536 = vmax.xlane.f32.xlu0 %v535
    %v537 = vpop.xlane.xlu0 %536
    %v538 = vsel %vm102, %v77, -inf
    %539 = vmax.xlane.f32.xlu0 %v538
    %v540 = vpop.xlane.xlu0 %539
    %v541 = vsel %vm102, %v78, -inf
    %542 = vmax.xlane.f32.xlu0 %v541
    %v543 = vpop.xlane.xlu0 %542
    %v544 = vsel %vm102, %v79, -inf
    %545 = vmax.xlane.f32.xlu0 %v544
    %v546 = vpop.xlane.xlu0 %545
    %v547 = vsel %vm102, %v80, -inf
    %548 = vmax.xlane.f32.xlu0 %v547
    %v549 = vpop.xlane.xlu0 %548
    %v550 = vsel %vm102, %v81, -inf
    %551 = vmax.xlane.f32.xlu0 %v550
    %v552 = vpop.xlane.xlu0 %551
    %v553 = vsel %vm102, %v82, -inf
    %554 = vmax.xlane.f32.xlu0 %v553
    %v555 = vpop.xlane.xlu0 %554
    %v556 = vsel %vm102, %v83, -inf
    %557 = vmax.xlane.f32.xlu0 %v556
    %v558 = vpop.xlane.xlu0 %557
    %v559 = vsel %vm102, %v84, -inf
    %560 = vmax.xlane.f32.xlu0 %v559
    %v561 = vpop.xlane.xlu0 %560
    %v562 = vsel %vm102, %v85, -inf
    %563 = vmax.xlane.f32.xlu0 %v562
    %v564 = vpop.xlane.xlu0 %563
    %v565 = vsel %vm102, %v86, -inf
    %566 = vmax.xlane.f32.xlu0 %v565
    %v567 = vpop.xlane.xlu0 %566
    %v568 = vsel %vm102, %v87, -inf
    %569 = vmax.xlane.f32.xlu0 %v568
    %v570 = vpop.xlane.xlu0 %569
    %v571 = vsel %vm102, %v88, -inf
    %572 = vmax.xlane.f32.xlu0 %v571
    %v573 = vpop.xlane.xlu0 %572
    %v574 = vsel %vm102, %v89, -inf
    %575 = vmax.xlane.f32.xlu0 %v574
    %v576 = vpop.xlane.xlu0 %575
    %v577 = vsel %vm102, %v90, -inf
    %578 = vmax.xlane.f32.xlu0 %v577
    %v579 = vpop.xlane.xlu0 %578
    %v580 = vsel %vm102, %v91, -inf
    %581 = vmax.xlane.f32.xlu0 %v580
    %v582 = vpop.xlane.xlu0 %581
    %v583 = vsel %vm102, %v92, -inf
    %584 = vmax.xlane.f32.xlu0 %v583
    %v585 = vpop.xlane.xlu0 %584
    %v586 = vsel %vm102, %v93, -inf
    %587 = vmax.xlane.f32.xlu0 %v586
    %v588 = vpop.xlane.xlu0 %587
    %vm589 = vcmp.gt.f32.partialorder %v531, 0.0
    %vm590 = vcmp.gt.f32.partialorder %v534, 0.0
    %vm591 = vcmp.gt.f32.partialorder %v537, 0.0
    %vm592 = vcmp.gt.f32.partialorder %v540, 0.0
    %vm593 = vcmp.gt.f32.partialorder %v543, 0.0
    %vm594 = vcmp.gt.f32.partialorder %v546, 0.0
    %vm595 = vcmp.gt.f32.partialorder %v549, 0.0
    %vm596 = vcmp.gt.f32.partialorder %v552, 0.0
    %vm597 = vcmp.gt.f32.partialorder %v555, 0.0
    %vm598 = vcmp.gt.f32.partialorder %v558, 0.0
    %vm599 = vcmp.gt.f32.partialorder %v561, 0.0
    %vm600 = vcmp.gt.f32.partialorder %v564, 0.0
    %vm601 = vcmp.gt.f32.partialorder %v567, 0.0
    %vm602 = vcmp.gt.f32.partialorder %v570, 0.0
    %vm603 = vcmp.gt.f32.partialorder %v573, 0.0
    %vm604 = vcmp.gt.f32.partialorder %v576, 0.0
    %vm605 = vcmp.gt.f32.partialorder %v579, 0.0
    %vm606 = vcmp.gt.f32.partialorder %v582, 0.0
    %vm607 = vcmp.gt.f32.partialorder %v585, 0.0
    %vm608 = vcmp.gt.f32.partialorder %v588, 0.0
    %v609 = vsel %vm589, %v431, -1e+30
    %v610 = vsel %vm590, %v436, -1e+30
    %v611 = vsel %vm591, %v441, -1e+30
    %v612 = vsel %vm592, %v446, -1e+30
    %v613 = vsel %vm593, %v451, -1e+30
    %v614 = vsel %vm594, %v456, -1e+30
    %v615 = vsel %vm595, %v461, -1e+30
    %v616 = vsel %vm596, %v466, -1e+30
    %v617 = vsel %vm597, %v471, -1e+30
    %v618 = vsel %vm598, %v476, -1e+30
    %v619 = vsel %vm599, %v481, -1e+30
    %v620 = vsel %vm600, %v486, -1e+30
    %v621 = vsel %vm601, %v491, -1e+30
    %v622 = vsel %vm602, %v496, -1e+30
    %v623 = vsel %vm603, %v501, -1e+30
    %v624 = vsel %vm604, %v506, -1e+30
    %v625 = vsel %vm605, %v511, -1e+30
    %v626 = vsel %vm606, %v516, -1e+30
    %v627 = vsel %vm607, %v521, -1e+30
    %v628 = vsel %vm608, %v526, -1e+30
    %vm629 = vcmask 7168
    %v630 = vsel %vm629, %v609, -inf
    %v631 = vsel %vm629, %v610, -inf
    %v632 = vsel %vm629, %v611, -inf
    %v633 = vsel %vm629, %v612, -inf
    %v634 = vsel %vm629, %v613, -inf
    %v635 = vmax.f32 %v630, %v634
    %v636 = vsel %vm629, %v614, -inf
    %v637 = vmax.f32 %v631, %v636
    %v638 = vsel %vm629, %v615, -inf
    %v639 = vmax.f32 %v632, %v638
    %v640 = vsel %vm629, %v616, -inf
    %v641 = vmax.f32 %v633, %v640
    %v642 = vsel %vm629, %v617, -inf
    %v643 = vmax.f32 %v635, %v642
    %v644 = vsel %vm629, %v618, -inf
    %v645 = vmax.f32 %v637, %v644
    %v646 = vsel %vm629, %v619, -inf
    %v647 = vmax.f32 %v639, %v646
    %v648 = vsel %vm629, %v620, -inf
    %v649 = vmax.f32 %v641, %v648
    %v650 = vsel %vm629, %v621, -inf
    %v651 = vmax.f32 %v643, %v650
    %v652 = vsel %vm629, %v622, -inf
    %v653 = vmax.f32 %v645, %v652
    %v654 = vsel %vm629, %v623, -inf
    %v655 = vmax.f32 %v647, %v654
    %v656 = vsel %vm629, %v624, -inf
    %v657 = vmax.f32 %v649, %v656
    %v658 = vsel %vm629, %v625, -inf
    %v659 = vmax.f32 %v651, %v658
    %v660 = vsel %vm629, %v626, -inf
    %v661 = vmax.f32 %v653, %v660
    %v662 = vsel %vm629, %v627, -inf
    %v663 = vmax.f32 %v655, %v662
    %v664 = vsel %vm629, %v628, -inf
    %v665 = vmax.f32 %v657, %v664
    %v666 = vmax.f32 %v659, %v661
    %v667 = vmax.f32 %v663, %v665
    %v668 = vmax.f32 %v666, %v667
    %669 = vmax.xlane.f32.xlu0 %v668
    %v670 = vpop.xlane.xlu0 %669
    %v671 = vrot.slane %v670, 4
    %v672 = vmax.f32 %v670, %v671
    %v673 = vrot.slane %v672, 2
    %v674 = vmax.f32 %v672, %v673
    %v675 = vrot.slane %v674, 1
    %v676 = vmax.f32 %v674, %v675
    %s677 = vtos %v676
    %v678 = vstv %s677
    %v679 = vsub.f32 %v609, %v678
    %v680 = vsub.f32 %v610, %v678
    %v681 = vsub.f32 %v611, %v678
    %v682 = vsub.f32 %v612, %v678
    %v683 = vsub.f32 %v613, %v678
    %v684 = vsub.f32 %v614, %v678
    %v685 = vsub.f32 %v615, %v678
    %v686 = vsub.f32 %v616, %v678
    %v687 = vsub.f32 %v617, %v678
    %v688 = vsub.f32 %v618, %v678
    %v689 = vsub.f32 %v619, %v678
    %v690 = vsub.f32 %v620, %v678
    %v691 = vsub.f32 %v621, %v678
    %v692 = vsub.f32 %v622, %v678
    %v693 = vsub.f32 %v623, %v678
    %v694 = vsub.f32 %v624, %v678
    %v695 = vsub.f32 %v625, %v678
    %v696 = vsub.f32 %v626, %v678
    %v697 = vsub.f32 %v627, %v678
    %v698 = vsub.f32 %v628, %v678
    %v699 = vmul.f32 %v679, 1.442695
    %v700 = vpow.pop %v699
    %v701 = vmul.f32 %v680, 1.442695
    %v702 = vpow.pop %v701
    %v703 = vmul.f32 %v681, 1.442695
    %v704 = vpow.pop %v703
    %v705 = vmul.f32 %v682, 1.442695
    %v706 = vpow.pop %v705
    %v707 = vmul.f32 %v683, 1.442695
    %v708 = vpow.pop %v707
    %v709 = vmul.f32 %v684, 1.442695
    %v710 = vpow.pop %v709
    %v711 = vmul.f32 %v685, 1.442695
    %v712 = vpow.pop %v711
    %v713 = vmul.f32 %v686, 1.442695
    %v714 = vpow.pop %v713
    %v715 = vmul.f32 %v687, 1.442695
    %v716 = vpow.pop %v715
    %v717 = vmul.f32 %v688, 1.442695
    %v718 = vpow.pop %v717
    %v719 = vmul.f32 %v689, 1.442695
    %v720 = vpow.pop %v719
    %v721 = vmul.f32 %v690, 1.442695
    %v722 = vpow.pop %v721
    %v723 = vmul.f32 %v691, 1.442695
    %v724 = vpow.pop %v723
    %v725 = vmul.f32 %v692, 1.442695
    %v726 = vpow.pop %v725
    %v727 = vmul.f32 %v693, 1.442695
    %v728 = vpow.pop %v727
    %v729 = vmul.f32 %v694, 1.442695
    %v730 = vpow.pop %v729
    %v731 = vmul.f32 %v695, 1.442695
    %v732 = vpow.pop %v731
    %v733 = vmul.f32 %v696, 1.442695
    %v734 = vpow.pop %v733
    %v735 = vmul.f32 %v697, 1.442695
    %v736 = vpow.pop %v735
    %v737 = vmul.f32 %v698, 1.442695
    %v738 = vpow.pop %v737
    %v739 = vlaneseq
    %v740 = vshrl.u32 %v739, 7
    %v741 = vadd.s32 %v740, 8
    %v742 = vadd.s32 %v740, 16
    %v743 = vcvt.s32.f32 %v740
    %v744 = vcvt.s32.f32 %v741
    %v745 = vcvt.s32.f32 %v742
    %v746 = vlaneseq
    %v747 = vand.u32 %v746, 127
    %v748 = vadd.s32 %v747, 128
    %v749 = vcvt.s32.f32 %v747
    %v750 = vcvt.s32.f32 %v748
    %v751 = vmul.f32 %v743, 8.0
    %v752 = vmul.f32 %v744, 8.0
    %v753 = vmul.f32 %v745, 8.0
    %vm754 = vcmp.ge.f32.partialorder %v749, %v751
    %vm755 = vcmp.ge.f32.partialorder %v750, %v751
    %vm756 = vcmp.ge.f32.partialorder %v749, %v752
    %vm757 = vcmp.ge.f32.partialorder %v750, %v752
    %vm758 = vcmp.ge.f32.partialorder %v749, %v753
    %vm759 = vcmp.ge.f32.partialorder %v750, %v753
    %v760 = vadd.f32 %v751, 8.0
    %v761 = vadd.f32 %v752, 8.0
    %v762 = vadd.f32 %v753, 8.0
    %vm763 = vcmp.lt.f32.partialorder %v749, %v760
    %vm764 = vcmp.lt.f32.partialorder %v750, %v760
    %vm765 = vcmp.lt.f32.partialorder %v749, %v761
    %vm766 = vcmp.lt.f32.partialorder %v750, %v761
    %vm767 = vcmp.lt.f32.partialorder %v749, %v762
    %vm768 = vcmp.lt.f32.partialorder %v750, %v762
    %vm769 = vmand %vm754, %vm763
    %vm770 = vmand %vm755, %vm764
    %vm771 = vmand %vm756, %vm765
    %vm772 = vmand %vm757, %vm766
    %vm773 = vmand %vm758, %vm767
    %vm774 = vmand %vm759, %vm768
    %v775 = vsel %vm769, 1, 0
    %v776 = vsel %vm770, 1, 0
    %v777 = vsel %vm771, 1, 0
    %v778 = vsel %vm772, 1, 0
    %v779 = vsel %vm773, 1, 0
    %v780 = vsel %vm774, 1, 0
    %v781 = vcvt.s32.f32 %v775
    %v782 = vcvt.s32.f32 %v776
    %v783 = vcvt.s32.f32 %v777
    %v784 = vcvt.s32.f32 %v778
    %v785 = vcvt.s32.f32 %v779
    %v786 = vcvt.s32.f32 %v780
    %v787 = vadd.s32 %v740, 24
    %v788 = vadd.s32 %v740, 32
    %v789 = vadd.s32 %v740, 40
    %v790 = vadd.s32 %v740, 48
    %v791 = vadd.s32 %v740, 56
    %v792 = vadd.s32 %v740, 64
    %v793 = vadd.s32 %v740, 72
    %v794 = vadd.s32 %v740, 80
    %v795 = vadd.s32 %v740, 88
    %v796 = vadd.s32 %v740, 96
    %v797 = vadd.s32 %v740, 104
    %v798 = vadd.s32 %v740, 112
    %v799 = vadd.s32 %v740, 120
    %v800 = vadd.s32 %v740, 128
    %v801 = vadd.s32 %v740, 136
    %v802 = vadd.s32 %v740, 144
    %v803 = vadd.s32 %v740, 152
    %v804 = vcvt.s32.f32 %v787
    %v805 = vcvt.s32.f32 %v788
    %v806 = vcvt.s32.f32 %v789
    %v807 = vcvt.s32.f32 %v790
    %v808 = vcvt.s32.f32 %v791
    %v809 = vcvt.s32.f32 %v792
    %v810 = vcvt.s32.f32 %v793
    %v811 = vcvt.s32.f32 %v794
    %v812 = vcvt.s32.f32 %v795
    %v813 = vcvt.s32.f32 %v796
    %v814 = vcvt.s32.f32 %v797
    %v815 = vcvt.s32.f32 %v798
    %v816 = vcvt.s32.f32 %v799
    %v817 = vcvt.s32.f32 %v800
    %v818 = vcvt.s32.f32 %v801
    %v819 = vcvt.s32.f32 %v802
    %v820 = vcvt.s32.f32 %v803
    %v821 = vmul.f32 %v749, 8.0
    %vm822 = vcmp.ge.f32.partialorder %v743, %v821
    %vm823 = vcmp.ge.f32.partialorder %v744, %v821
    %vm824 = vcmp.ge.f32.partialorder %v745, %v821
    %vm825 = vcmp.ge.f32.partialorder %v804, %v821
    %vm826 = vcmp.ge.f32.partialorder %v805, %v821
    %vm827 = vcmp.ge.f32.partialorder %v806, %v821
    %vm828 = vcmp.ge.f32.partialorder %v807, %v821
    %vm829 = vcmp.ge.f32.partialorder %v808, %v821
    %vm830 = vcmp.ge.f32.partialorder %v809, %v821
    %vm831 = vcmp.ge.f32.partialorder %v810, %v821
    %vm832 = vcmp.ge.f32.partialorder %v811, %v821
    %vm833 = vcmp.ge.f32.partialorder %v812, %v821
    %vm834 = vcmp.ge.f32.partialorder %v813, %v821
    %vm835 = vcmp.ge.f32.partialorder %v814, %v821
    %vm836 = vcmp.ge.f32.partialorder %v815, %v821
    %vm837 = vcmp.ge.f32.partialorder %v816, %v821
    %vm838 = vcmp.ge.f32.partialorder %v817, %v821
    %vm839 = vcmp.ge.f32.partialorder %v818, %v821
    %vm840 = vcmp.ge.f32.partialorder %v819, %v821
    %vm841 = vcmp.ge.f32.partialorder %v820, %v821
    %v842 = vadd.f32 %v821, 8.0
    %vm843 = vcmp.lt.f32.partialorder %v743, %v842
    %vm844 = vcmp.lt.f32.partialorder %v744, %v842
    %vm845 = vcmp.lt.f32.partialorder %v745, %v842
    %vm846 = vcmp.lt.f32.partialorder %v804, %v842
    %vm847 = vcmp.lt.f32.partialorder %v805, %v842
    %vm848 = vcmp.lt.f32.partialorder %v806, %v842
    %vm849 = vcmp.lt.f32.partialorder %v807, %v842
    %vm850 = vcmp.lt.f32.partialorder %v808, %v842
    %vm851 = vcmp.lt.f32.partialorder %v809, %v842
    %vm852 = vcmp.lt.f32.partialorder %v810, %v842
    %vm853 = vcmp.lt.f32.partialorder %v811, %v842
    %vm854 = vcmp.lt.f32.partialorder %v812, %v842
    %vm855 = vcmp.lt.f32.partialorder %v813, %v842
    %vm856 = vcmp.lt.f32.partialorder %v814, %v842
    %vm857 = vcmp.lt.f32.partialorder %v815, %v842
    %vm858 = vcmp.lt.f32.partialorder %v816, %v842
    %vm859 = vcmp.lt.f32.partialorder %v817, %v842
    %vm860 = vcmp.lt.f32.partialorder %v818, %v842
    %vm861 = vcmp.lt.f32.partialorder %v819, %v842
    %vm862 = vcmp.lt.f32.partialorder %v820, %v842
    %vm863 = vmand %vm822, %vm843
    %vm864 = vmand %vm823, %vm844
    %vm865 = vmand %vm824, %vm845
    %vm866 = vmand %vm825, %vm846
    %vm867 = vmand %vm826, %vm847
    %vm868 = vmand %vm827, %vm848
    %vm869 = vmand %vm828, %vm849
    %vm870 = vmand %vm829, %vm850
    %vm871 = vmand %vm830, %vm851
    %vm872 = vmand %vm831, %vm852
    %vm873 = vmand %vm832, %vm853
    %vm874 = vmand %vm833, %vm854
    %vm875 = vmand %vm834, %vm855
    %vm876 = vmand %vm835, %vm856
    %vm877 = vmand %vm836, %vm857
    %vm878 = vmand %vm837, %vm858
    %vm879 = vmand %vm838, %vm859
    %vm880 = vmand %vm839, %vm860
    %vm881 = vmand %vm840, %vm861
    %vm882 = vmand %vm841, %vm862
    %v883 = vsel %vm863, 1, 0
    %v884 = vsel %vm864, 1, 0
    %v885 = vsel %vm865, 1, 0
    %v886 = vsel %vm866, 1, 0
    %v887 = vsel %vm867, 1, 0
    %v888 = vsel %vm868, 1, 0
    %v889 = vsel %vm869, 1, 0
    %v890 = vsel %vm870, 1, 0
    %v891 = vsel %vm871, 1, 0
    %v892 = vsel %vm872, 1, 0
    %v893 = vsel %vm873, 1, 0
    %v894 = vsel %vm874, 1, 0
    %v895 = vsel %vm875, 1, 0
    %v896 = vsel %vm876, 1, 0
    %v897 = vsel %vm877, 1, 0
    %v898 = vsel %vm878, 1, 0
    %v899 = vsel %vm879, 1, 0
    %v900 = vsel %vm880, 1, 0
    %v901 = vsel %vm881, 1, 0
    %v902 = vsel %vm882, 1, 0
    %v903 = vcvt.s32.f32 %v883
    %v904 = vcvt.s32.f32 %v884
    %v905 = vcvt.s32.f32 %v885
    %v906 = vcvt.s32.f32 %v886
    %v907 = vcvt.s32.f32 %v887
    %v908 = vcvt.s32.f32 %v888
    %v909 = vcvt.s32.f32 %v889
    %v910 = vcvt.s32.f32 %v890
    %v911 = vcvt.s32.f32 %v891
    %v912 = vcvt.s32.f32 %v892
    %v913 = vcvt.s32.f32 %v893
    %v914 = vcvt.s32.f32 %v894
    %v915 = vcvt.s32.f32 %v895
    %v916 = vcvt.s32.f32 %v896
    %v917 = vcvt.s32.f32 %v897
    %v918 = vcvt.s32.f32 %v898
    %v919 = vcvt.s32.f32 %v899
    %v920 = vcvt.s32.f32 %v900
    %v921 = vcvt.s32.f32 %v901
    %v922 = vcvt.s32.f32 %v902
    %vm923 = vcmask 261120
    %v925 = vsel %vm923, %v782, 0
    %v928 = vsel %vm923, %v784, 0
    %v931 = vsel %vm923, %v786, 0
    %933 = vmatprep.subr.mxu0 0.0
    %934 = vmatpush1.msra.mxu0 %v700
    %935 = vmatprep.subr.mxu0 0.0
    %936 = vmatpush1.msra.mxu0 %v702
    %937 = vmatprep.subr.mxu0 0.0
    %938 = vmatpush1.msra.mxu0 %v704
    %939 = vmatprep.subr.mxu0 0.0
    %940 = vmatpush1.msra.mxu0 %v706
    %941 = vmatprep.subr.mxu0 0.0
    %942 = vmatpush1.msra.mxu0 %v708
    %943 = vmatprep.subr.mxu0 0.0
    %944 = vmatpush1.msra.mxu0 %v710
    %945 = vmatprep.subr.mxu0 0.0
    %946 = vmatpush1.msra.mxu0 %v712
    %947 = vmatprep.subr.mxu0 0.0
    %948 = vmatpush1.msra.mxu0 %v714
    %949 = vmatprep.subr.mxu0 0.0
    %950 = vmatpush1.msra.mxu0 %v716
    %951 = vmatprep.subr.mxu0 0.0
    %952 = vmatpush1.msra.mxu0 %v718
    %953 = vmatprep.subr.mxu0 0.0
    %954 = vmatpush1.msra.mxu0 %v720
    %955 = vmatprep.subr.mxu0 0.0
    %956 = vmatpush1.msra.mxu0 %v722
    %957 = vmatprep.subr.mxu0 0.0
    %958 = vmatpush1.msra.mxu0 %v724
    %959 = vmatprep.subr.mxu0 0.0
    %960 = vmatpush1.msra.mxu0 %v726
    %961 = vmatprep.subr.mxu0 0.0
    %962 = vmatpush1.msra.mxu0 %v728
    %963 = vmatprep.subr.mxu0 0.0
    %964 = vmatpush1.msra.mxu0 %v730
    %965 = vmatprep.subr.mxu0 0.0
    %966 = vmatpush1.msra.mxu0 %v732
    %967 = vmatprep.subr.mxu0 0.0
    %968 = vmatpush1.msra.mxu0 %v734
    %969 = vmatprep.subr.mxu0 0.0
    %970 = vmatpush1.msra.mxu0 %v736
    %971 = vmatprep.subr.mxu0 0.0
    %972 = vmatpush1.msra.mxu0 %v738
    %973 = vmatprep.subr.mxu0 0.0
    %974 = vmatpush1.msra.mxu0 0.0
    %975 = vmatprep.subr.mxu0 0.0
    %976 = vmatpush1.msra.mxu0 0.0
    %977 = vmatprep.subr.mxu0 0.0
    %978 = vmatpush1.msra.mxu0 0.0
    %979 = vmatprep.subr.mxu0 0.0
    %980 = vmatpush1.msra.mxu0 0.0
    %981 = vmatprep.subr.mxu0 0.0
    %982 = vmatpush1.msra.mxu0 0.0
    %983 = vmatprep.subr.mxu0 0.0
    %984 = vmatpush1.msra.mxu0 0.0
    %985 = vmatprep.subr.mxu0 0.0
    %986 = vmatpush1.msra.mxu0 0.0
    %987 = vmatprep.subr.mxu0 0.0
    %988 = vmatpush1.msra.mxu0 0.0
    %989 = vmatprep.subr.mxu0 0.0
    %990 = vmatpush1.msra.mxu0 0.0
    %991 = vmatprep.subr.mxu0 0.0
    %992 = vmatpush1.msra.mxu0 0.0
    %993 = vmatprep.subr.mxu0 0.0
    %994 = vmatpush1.msra.mxu0 0.0
    %995 = vmatprep.subr.mxu0 0.0
    %996 = vmatpush1.msra.mxu0 0.0
    %997 = vmatprep.mubr.f32.mxu0 %v925
    %998 = vmatmul.mubr.f32.gmra.mrb[0].mxu0 %v781
    %v999 = vpop.f32.mrb[0].mxu0
    %v1000 = vadd.f32 0.0, %v999
    %v1001 = vpop.f32.mrb[0].mxu0
    %1002 = vmatprep.mubr.f32.mxu0 %v928
    %1003 = vmatmul.mubr.f32.gmra.mrb[0].mxu0 %v783
    %v1004 = vpop.f32.mrb[0].mxu0
    %v1005 = vadd.f32 0.0, %v1004
    %v1006 = vpop.f32.mrb[0].mxu0
    %1007 = vmatprep.mubr.f32.mxu0 %v931
    %1008 = vmatmul.mubr.f32.gmra.mrb[0].mxu0 %v785
    %v1009 = vpop.f32.mrb[0].mxu0
    %v1010 = vadd.f32 0.0, %v1009
    %v1011 = vpop.f32.mrb[0].mxu0
    %1012 = vdwg.mxu0
    %1014 = vset.pattern.permute.xlu0 0
    %1015 = vperm.xlu0 %1014, %v700
    %v1016 = vpop.permute.xlu0 %1015
    %1019 = vset.pattern.permute.xlu0 0
    %1020 = vperm.xlu0 %1019, %v702
    %v1021 = vpop.permute.xlu0 %1020
    %1024 = vset.pattern.permute.xlu0 0
    %1025 = vperm.xlu0 %1024, %v704
    %v1026 = vpop.permute.xlu0 %1025
    %1029 = vset.pattern.permute.xlu0 0
    %1030 = vperm.xlu0 %1029, %v706
    %v1031 = vpop.permute.xlu0 %1030
    %1034 = vset.pattern.permute.xlu0 0
    %1035 = vperm.xlu0 %1034, %v708
    %v1036 = vpop.permute.xlu0 %1035
    %1039 = vset.pattern.permute.xlu0 0
    %1040 = vperm.xlu0 %1039, %v710
    %v1041 = vpop.permute.xlu0 %1040
    %1044 = vset.pattern.permute.xlu0 0
    %1045 = vperm.xlu0 %1044, %v712
    %v1046 = vpop.permute.xlu0 %1045
    %1049 = vset.pattern.permute.xlu0 0
    %1050 = vperm.xlu0 %1049, %v714
    %v1051 = vpop.permute.xlu0 %1050
    %1054 = vset.pattern.permute.xlu0 0
    %1055 = vperm.xlu0 %1054, %v716
    %v1056 = vpop.permute.xlu0 %1055
    %1059 = vset.pattern.permute.xlu0 0
    %1060 = vperm.xlu0 %1059, %v718
    %v1061 = vpop.permute.xlu0 %1060
    %1064 = vset.pattern.permute.xlu0 0
    %1065 = vperm.xlu0 %1064, %v720
    %v1066 = vpop.permute.xlu0 %1065
    %1069 = vset.pattern.permute.xlu0 0
    %1070 = vperm.xlu0 %1069, %v722
    %v1071 = vpop.permute.xlu0 %1070
    %1074 = vset.pattern.permute.xlu0 0
    %1075 = vperm.xlu0 %1074, %v724
    %v1076 = vpop.permute.xlu0 %1075
    %1079 = vset.pattern.permute.xlu0 0
    %1080 = vperm.xlu0 %1079, %v726
    %v1081 = vpop.permute.xlu0 %1080
    %1084 = vset.pattern.permute.xlu0 0
    %1085 = vperm.xlu0 %1084, %v728
    %v1086 = vpop.permute.xlu0 %1085
    %1089 = vset.pattern.permute.xlu0 0
    %1090 = vperm.xlu0 %1089, %v730
    %v1091 = vpop.permute.xlu0 %1090
    %1094 = vset.pattern.permute.xlu0 0
    %1095 = vperm.xlu0 %1094, %v732
    %v1096 = vpop.permute.xlu0 %1095
    %1099 = vset.pattern.permute.xlu0 0
    %1100 = vperm.xlu0 %1099, %v734
    %v1101 = vpop.permute.xlu0 %1100
    %1104 = vset.pattern.permute.xlu0 0
    %1105 = vperm.xlu0 %1104, %v736
    %v1106 = vpop.permute.xlu0 %1105
    %1109 = vset.pattern.permute.xlu0 0
    %1110 = vperm.xlu0 %1109, %v738
    %v1111 = vpop.permute.xlu0 %1110
    %v1113 = vmul.f32 %v1016, %v328
    %v1114 = vmul.f32 %v1021, %v329
    %v1115 = vmul.f32 %v1026, %v330
    %v1116 = vmul.f32 %v1031, %v331
    %v1117 = vmul.f32 %v1036, %v332
    %v1118 = vmul.f32 %v1041, %v333
    %v1119 = vmul.f32 %v1046, %v334
    %v1120 = vmul.f32 %v1051, %v335
    %v1121 = vmul.f32 %v1056, %v336
    %v1122 = vmul.f32 %v1061, %v337
    %v1123 = vmul.f32 %v1066, %v338
    %v1124 = vmul.f32 %v1071, %v339
    %v1125 = vmul.f32 %v1076, %v340
    %v1126 = vmul.f32 %v1081, %v341
    %v1127 = vmul.f32 %v1086, %v342
    %v1128 = vmul.f32 %v1091, %v343
    %v1129 = vmul.f32 %v1096, %v344
    %v1130 = vmul.f32 %v1101, %v345
    %v1131 = vmul.f32 %v1106, %v346
    %v1132 = vmul.f32 %v1111, %v347
    %1133 = vmatprep.subr.mxu0 0.0
    %1134 = vmatpush1.msra.mxu0 %v1113
    %1135 = vmatprep.subr.mxu0 0.0
    %1136 = vmatpush1.msra.mxu0 %v1114
    %1137 = vmatprep.subr.mxu0 0.0
    %1138 = vmatpush1.msra.mxu0 %v1115
    %1139 = vmatprep.subr.mxu0 0.0
    %1140 = vmatpush1.msra.mxu0 %v1116
    %1141 = vmatprep.subr.mxu0 0.0
    %1142 = vmatpush1.msra.mxu0 %v1117
    %1143 = vmatprep.subr.mxu0 0.0
    %1144 = vmatpush1.msra.mxu0 %v1118
    %1145 = vmatprep.subr.mxu0 0.0
    %1146 = vmatpush1.msra.mxu0 %v1119
    %1147 = vmatprep.subr.mxu0 0.0
    %1148 = vmatpush1.msra.mxu0 %v1120
    %1149 = vmatprep.subr.mxu0 0.0
    %1150 = vmatpush1.msra.mxu0 %v1121
    %1151 = vmatprep.subr.mxu0 0.0
    %1152 = vmatpush1.msra.mxu0 %v1122
    %1153 = vmatprep.subr.mxu0 0.0
    %1154 = vmatpush1.msra.mxu0 %v1123
    %1155 = vmatprep.subr.mxu0 0.0
    %1156 = vmatpush1.msra.mxu0 %v1124
    %1157 = vmatprep.subr.mxu0 0.0
    %1158 = vmatpush1.msra.mxu0 %v1125
    %1159 = vmatprep.subr.mxu0 0.0
    %1160 = vmatpush1.msra.mxu0 %v1126
    %1161 = vmatprep.subr.mxu0 0.0
    %1162 = vmatpush1.msra.mxu0 %v1127
    %1163 = vmatprep.subr.mxu0 0.0
    %1164 = vmatpush1.msra.mxu0 %v1128
    %1165 = vmatprep.subr.mxu0 0.0
    %1166 = vmatpush1.msra.mxu0 %v1129
    %1167 = vmatprep.subr.mxu0 0.0
    %1168 = vmatpush1.msra.mxu0 %v1130
    %1169 = vmatprep.subr.mxu0 0.0
    %1170 = vmatpush1.msra.mxu0 %v1131
    %1171 = vmatprep.subr.mxu0 0.0
    %1172 = vmatpush1.msra.mxu0 %v1132
    %1173 = vmatprep.subr.mxu0 0.0
    %1174 = vmatpush1.msra.mxu0 0.0
    %1175 = vmatprep.subr.mxu0 0.0
    %1176 = vmatpush1.msra.mxu0 0.0
    %1177 = vmatprep.subr.mxu0 0.0
    %1178 = vmatpush1.msra.mxu0 0.0
    %1179 = vmatprep.subr.mxu0 0.0
    %1180 = vmatpush1.msra.mxu0 0.0
    %1181 = vmatprep.subr.mxu0 0.0
    %1182 = vmatpush1.msra.mxu0 0.0
    %1183 = vmatprep.subr.mxu0 0.0
    %1184 = vmatpush1.msra.mxu0 0.0
    %1185 = vmatprep.subr.mxu0 0.0
    %1186 = vmatpush1.msra.mxu0 0.0
    %1187 = vmatprep.subr.mxu0 0.0
    %1188 = vmatpush1.msra.mxu0 0.0
    %1189 = vmatprep.subr.mxu0 0.0
    %1190 = vmatpush1.msra.mxu0 0.0
    %1191 = vmatprep.subr.mxu0 0.0
    %1192 = vmatpush1.msra.mxu0 0.0
    %1193 = vmatprep.subr.mxu0 0.0
    %1194 = vmatpush1.msra.mxu0 0.0
    %1195 = vmatprep.subr.mxu0 0.0
    %1196 = vmatpush1.msra.mxu0 0.0
    %1197 = vmatprep.mubr.f32.mxu0 %v925
    %1198 = vmatmul.mubr.f32.gmra.mrb[0].mxu0 %v781
    %v1199 = vpop.f32.mrb[0].mxu0
    %v1200 = vadd.f32 0.0, %v1199
    %v1201 = vpop.f32.mrb[0].mxu0
    %1202 = vmatprep.mubr.f32.mxu0 %v928
    %1203 = vmatmul.mubr.f32.gmra.mrb[0].mxu0 %v783
    %v1204 = vpop.f32.mrb[0].mxu0
    %v1205 = vadd.f32 0.0, %v1204
    %v1206 = vpop.f32.mrb[0].mxu0
    %1207 = vmatprep.mubr.f32.mxu0 %v931
    %1208 = vmatmul.mubr.f32.gmra.mrb[0].mxu0 %v785
    %v1209 = vpop.f32.mrb[0].mxu0
    %v1210 = vadd.f32 0.0, %v1209
    %v1211 = vpop.f32.mrb[0].mxu0
    %1212 = vdwg.mxu0
    %v1213 = vmax.f32 %v1000, 1e-30
    %v1214 = vmax.f32 %v1005, 1e-30
    %v1215 = vmax.f32 %v1010, 1e-30
    %1217 = vset.pattern.permute.xlu0 0
    %1218 = vperm.xlu0 %1217, %v1213
    %v1219 = vpop.permute.xlu0 %1218
    %1222 = vset.pattern.permute.xlu0 0
    %1223 = vperm.xlu0 %1222, %v1214
    %v1224 = vpop.permute.xlu0 %1223
    %1227 = vset.pattern.permute.xlu0 0
    %1228 = vperm.xlu0 %1227, %v1215
    %v1229 = vpop.permute.xlu0 %1228
    %v1231 = vrcp.pop %v1219
    %v1232 = vmul.f32 %v1200, %v1231
    %v1233 = vrcp.pop %v1224
    %v1234 = vmul.f32 %v1205, %v1233
    %v1235 = vrcp.pop %v1229
    %v1236 = vmul.f32 %v1210, %v1235
    %1237 = vst [vmem:[#allocation4] sm:$0xff] %v1232
    %1238 = vst [vmem:[#allocation4 + $0x8] sm:$0xff] %v1234
    %1239 = vst [vmem:[#allocation4 + $0x10] sm:$0xf] %v1236
    %v1240 = vld [vmem:[%s5] sm:$0xff]
    %v1241 = vld [vmem:[%s5 + $0x8] sm:$0xff]
    %v1242 = vld [vmem:[%s5 + $0x10] sm:$0xff]
    %v1243 = vld [vmem:[%s5 + $0x18] sm:$0xff]
    %v1244 = vld [vmem:[%s5 + $0x20] sm:$0xff]
    %v1245 = vld [vmem:[%s5 + $0x28] sm:$0xff]
    %v1246 = vld [vmem:[%s5 + $0x30] sm:$0xff]
    %v1247 = vld [vmem:[%s5 + $0x38] sm:$0xff]
    %v1248 = vld [vmem:[%s5 + $0x40] sm:$0xff]
    %v1249 = vld [vmem:[%s5 + $0x48] sm:$0xff]
    %v1250 = vld [vmem:[%s5 + $0x50] sm:$0xff]
    %v1251 = vld [vmem:[%s5 + $0x58] sm:$0xff]
    %v1252 = vld [vmem:[%s5 + $0x60] sm:$0xff]
    %v1253 = vld [vmem:[%s5 + $0x68] sm:$0xff]
    %v1254 = vld [vmem:[%s5 + $0x70] sm:$0xff]
    %v1255 = vld [vmem:[%s5 + $0x78] sm:$0xff]
    %v1256 = vld [vmem:[%s6] sm:$0x1]
    %v1258 = vlaneseq
    %v1259 = vshrl.u32 %v1258, 7
    %v1260 = vsub.s32 0, %v1259
    %v1261 = vrot.slane %v1256, %v1260
    %1263 = vmatprep.subr.mxu0 0.0
    %1264 = vmatpush1.msra.mxu0 %v1240
    %1265 = vmatprep.subr.mxu0 0.0
    %1266 = vmatpush1.msra.mxu0 %v1241
    %1267 = vmatprep.subr.mxu0 0.0
    %1268 = vmatpush1.msra.mxu0 %v1242
    %1269 = vmatprep.subr.mxu0 0.0
    %1270 = vmatpush1.msra.mxu0 %v1243
    %1271 = vmatprep.subr.mxu0 0.0
    %1272 = vmatpush1.msra.mxu0 %v1244
    %1273 = vmatprep.subr.mxu0 0.0
    %1274 = vmatpush1.msra.mxu0 %v1245
    %1275 = vmatprep.subr.mxu0 0.0
    %1276 = vmatpush1.msra.mxu0 %v1246
    %1277 = vmatprep.subr.mxu0 0.0
    %1278 = vmatpush1.msra.mxu0 %v1247
    %1279 = vmatprep.subr.mxu0 0.0
    %1280 = vmatpush1.msra.mxu0 %v1248
    %1281 = vmatprep.subr.mxu0 0.0
    %1282 = vmatpush1.msra.mxu0 %v1249
    %1283 = vmatprep.subr.mxu0 0.0
    %1284 = vmatpush1.msra.mxu0 %v1250
    %1285 = vmatprep.subr.mxu0 0.0
    %1286 = vmatpush1.msra.mxu0 %v1251
    %1287 = vmatprep.subr.mxu0 0.0
    %1288 = vmatpush1.msra.mxu0 %v1252
    %1289 = vmatprep.subr.mxu0 0.0
    %1290 = vmatpush1.msra.mxu0 %v1253
    %1291 = vmatprep.subr.mxu0 0.0
    %1292 = vmatpush1.msra.mxu0 %v1254
    %1293 = vmatprep.subr.mxu0 0.0
    %1294 = vmatpush1.msra.mxu0 %v1255
    %1295 = vmatprep.subr.mxu0 0.0
    %1296 = vmatpush1.msra.mxu0 0.0
    %1297 = vmatprep.subr.mxu0 0.0
    %1298 = vmatpush1.msra.mxu0 0.0
    %1299 = vmatprep.subr.mxu0 0.0
    %1300 = vmatpush1.msra.mxu0 0.0
    %1301 = vmatprep.subr.mxu0 0.0
    %1302 = vmatpush1.msra.mxu0 0.0
    %1303 = vmatprep.subr.mxu0 0.0
    %1304 = vmatpush1.msra.mxu0 0.0
    %1305 = vmatprep.subr.mxu0 0.0
    %1306 = vmatpush1.msra.mxu0 0.0
    %1307 = vmatprep.subr.mxu0 0.0
    %1308 = vmatpush1.msra.mxu0 0.0
    %1309 = vmatprep.subr.mxu0 0.0
    %1310 = vmatpush1.msra.mxu0 0.0
    %1311 = vmatprep.subr.mxu0 0.0
    %1312 = vmatpush1.msra.mxu0 0.0
    %1313 = vmatprep.subr.mxu0 0.0
    %1314 = vmatpush1.msra.mxu0 0.0
    %1315 = vmatprep.subr.mxu0 0.0
    %1316 = vmatpush1.msra.mxu0 0.0
    %1317 = vmatprep.subr.mxu0 0.0
    %1318 = vmatpush1.msra.mxu0 0.0
    %1319 = vmatprep.subr.mxu0 0.0
    %1320 = vmatpush1.msra.mxu0 0.0
    %1321 = vmatprep.subr.mxu0 0.0
    %1322 = vmatpush1.msra.mxu0 0.0
    %1323 = vmatprep.subr.mxu0 0.0
    %1324 = vmatpush1.msra.mxu0 0.0
    %1325 = vmatprep.subr.mxu0 0.0
    %1326 = vmatpush1.msra.mxu0 0.0
    %1327 = vmatprep.mubr.f32.mxu0 0.0
    %1328 = vmatmul.mubr.f32.gmra.mrb[0].mxu0 %v1232
    %v1329 = vpop.f32.mrb[0].mxu0
    %v1330 = vadd.f32 %v1261, %v1329
    %v1331 = vpop.f32.mrb[0].mxu0
    %1332 = vmatprep.mubr.f32.mxu0 0.0
    %1333 = vmatmul.mubr.f32.gmra.mrb[0].mxu0 %v1234
    %v1334 = vpop.f32.mrb[0].mxu0
    %v1335 = vadd.f32 %v1261, %v1334
    %v1336 = vpop.f32.mrb[0].mxu0
    %1337 = vmatprep.mubr.f32.mxu0 0.0
    %1338 = vmatmul.mubr.f32.gmra.mrb[0].mxu0 %v1236
    %v1339 = vpop.f32.mrb[0].mxu0
    %v1340 = vadd.f32 %v1261, %v1339
    %v1341 = vpop.f32.mrb[0].mxu0
    %1342 = vdwg.mxu0
    %vm1343 = vcmask 162816
    %v1345 = vsel %vm1343, %v903, 0
    %v1348 = vsel %vm1343, %v904, 0
    %v1351 = vsel %vm1343, %v905, 0
    %v1354 = vsel %vm1343, %v906, 0
    %v1357 = vsel %vm1343, %v907, 0
    %v1360 = vsel %vm1343, %v908, 0
    %v1363 = vsel %vm1343, %v909, 0
    %v1366 = vsel %vm1343, %v910, 0
    %v1369 = vsel %vm1343, %v911, 0
    %v1372 = vsel %vm1343, %v912, 0
    %v1375 = vsel %vm1343, %v913, 0
    %v1378 = vsel %vm1343, %v914, 0
    %v1381 = vsel %vm1343, %v915, 0
    %v1384 = vsel %vm1343, %v916, 0
    %v1387 = vsel %vm1343, %v917, 0
    %v1390 = vsel %vm1343, %v918, 0
    %v1393 = vsel %vm1343, %v919, 0
    %v1396 = vsel %vm1343, %v920, 0
    %v1399 = vsel %vm1343, %v921, 0
    %v1402 = vsel %vm1343, %v922, 0
    %vm1404 = vcmask 1043456
    %v1406 = vsel %vm1404, %v1340, 0
    %1408 = vmatprep.subr.mxu0 0.0
    %1409 = vmatpush1.msra.mxu0 %v1330
    %1410 = vmatprep.subr.mxu0 0.0
    %1411 = vmatpush1.msra.mxu0 %v1335
    %1412 = vmatprep.subr.mxu0 0.0
    %1413 = vmatpush1.msra.mxu0 %v1406
    %1414 = vmatprep.subr.mxu0 0.0
    %1415 = vmatpush1.msra.mxu0 0.0
    %1416 = vmatprep.subr.mxu0 0.0
    %1417 = vmatpush1.msra.mxu0 0.0
    %1418 = vmatprep.subr.mxu0 0.0
    %1419 = vmatpush1.msra.mxu0 0.0
    %1420 = vmatprep.subr.mxu0 0.0
    %1421 = vmatpush1.msra.mxu0 0.0
    %1422 = vmatprep.subr.mxu0 0.0
    %1423 = vmatpush1.msra.mxu0 0.0
    %1424 = vmatprep.subr.mxu0 0.0
    %1425 = vmatpush1.msra.mxu0 0.0
    %1426 = vmatprep.subr.mxu0 0.0
    %1427 = vmatpush1.msra.mxu0 0.0
    %1428 = vmatprep.subr.mxu0 0.0
    %1429 = vmatpush1.msra.mxu0 0.0
    %1430 = vmatprep.subr.mxu0 0.0
    %1431 = vmatpush1.msra.mxu0 0.0
    %1432 = vmatprep.subr.mxu0 0.0
    %1433 = vmatpush1.msra.mxu0 0.0
    %1434 = vmatprep.subr.mxu0 0.0
    %1435 = vmatpush1.msra.mxu0 0.0
    %1436 = vmatprep.subr.mxu0 0.0
    %1437 = vmatpush1.msra.mxu0 0.0
    %1438 = vmatprep.subr.mxu0 0.0
    %1439 = vmatpush1.msra.mxu0 0.0
    %1440 = vmatprep.subr.mxu0 0.0
    %1441 = vmatpush1.msra.mxu0 0.0
    %1442 = vmatprep.subr.mxu0 0.0
    %1443 = vmatpush1.msra.mxu0 0.0
    %1444 = vmatprep.subr.mxu0 0.0
    %1445 = vmatpush1.msra.mxu0 0.0
    %1446 = vmatprep.subr.mxu0 0.0
    %1447 = vmatpush1.msra.mxu0 0.0
    %1448 = vmatprep.subr.mxu0 0.0
    %1449 = vmatpush1.msra.mxu0 0.0
    %1450 = vmatprep.subr.mxu0 0.0
    %1451 = vmatpush1.msra.mxu0 0.0
    %1452 = vmatprep.subr.mxu0 0.0
    %1453 = vmatpush1.msra.mxu0 0.0
    %1454 = vmatprep.subr.mxu0 0.0
    %1455 = vmatpush1.msra.mxu0 0.0
    %1456 = vmatprep.subr.mxu0 0.0
    %1457 = vmatpush1.msra.mxu0 0.0
    %1458 = vmatprep.subr.mxu0 0.0
    %1459 = vmatpush1.msra.mxu0 0.0
    %1460 = vmatprep.subr.mxu0 0.0
    %1461 = vmatpush1.msra.mxu0 0.0
    %1462 = vmatprep.subr.mxu0 0.0
    %1463 = vmatpush1.msra.mxu0 0.0
    %1464 = vmatprep.subr.mxu0 0.0
    %1465 = vmatpush1.msra.mxu0 0.0
    %1466 = vmatprep.subr.mxu0 0.0
    %1467 = vmatpush1.msra.mxu0 0.0
    %1468 = vmatprep.subr.mxu0 0.0
    %1469 = vmatpush1.msra.mxu0 0.0
    %1470 = vmatprep.subr.mxu0 0.0
    %1471 = vmatpush1.msra.mxu0 0.0
    %1472 = vmatprep.mubr.f32.mxu0 0.0
    %1473 = vmatmul.mubr.f32.gmra.mrb[0].mxu0 %v1345
    %v1474 = vpop.f32.mrb[0].mxu0
    %v1475 = vadd.f32 0.0, %v1474
    %v1476 = vpop.f32.mrb[0].mxu0
    %1477 = vmatprep.mubr.f32.mxu0 0.0
    %1478 = vmatmul.mubr.f32.gmra.mrb[0].mxu0 %v1348
    %v1479 = vpop.f32.mrb[0].mxu0
    %v1480 = vadd.f32 0.0, %v1479
    %v1481 = vpop.f32.mrb[0].mxu0
    %1482 = vmatprep.mubr.f32.mxu0 0.0
    %1483 = vmatmul.mubr.f32.gmra.mrb[0].mxu0 %v1351
    %v1484 = vpop.f32.mrb[0].mxu0
    %v1485 = vadd.f32 0.0, %v1484
    %v1486 = vpop.f32.mrb[0].mxu0
    %1487 = vmatprep.mubr.f32.mxu0 0.0
    %1488 = vmatmul.mubr.f32.gmra.mrb[0].mxu0 %v1354
    %v1489 = vpop.f32.mrb[0].mxu0
    %v1490 = vadd.f32 0.0, %v1489
    %v1491 = vpop.f32.mrb[0].mxu0
    %1492 = vmatprep.mubr.f32.mxu0 0.0
    %1493 = vmatmul.mubr.f32.gmra.mrb[0].mxu0 %v1357
    %v1494 = vpop.f32.mrb[0].mxu0
    %v1495 = vadd.f32 0.0, %v1494
    %v1496 = vpop.f32.mrb[0].mxu0
    %1497 = vmatprep.mubr.f32.mxu0 0.0
    %1498 = vmatmul.mubr.f32.gmra.mrb[0].mxu0 %v1360
    %v1499 = vpop.f32.mrb[0].mxu0
    %v1500 = vadd.f32 0.0, %v1499
    %v1501 = vpop.f32.mrb[0].mxu0
    %1502 = vmatprep.mubr.f32.mxu0 0.0
    %1503 = vmatmul.mubr.f32.gmra.mrb[0].mxu0 %v1363
    %v1504 = vpop.f32.mrb[0].mxu0
    %v1505 = vadd.f32 0.0, %v1504
    %v1506 = vpop.f32.mrb[0].mxu0
    %1507 = vmatprep.mubr.f32.mxu0 0.0
    %1508 = vmatmul.mubr.f32.gmra.mrb[0].mxu0 %v1366
    %v1509 = vpop.f32.mrb[0].mxu0
    %v1510 = vadd.f32 0.0, %v1509
    %v1511 = vpop.f32.mrb[0].mxu0
    %1512 = vmatprep.mubr.f32.mxu0 0.0
    %1513 = vmatmul.mubr.f32.gmra.mrb[0].mxu0 %v1369
    %v1514 = vpop.f32.mrb[0].mxu0
    %v1515 = vadd.f32 0.0, %v1514
    %v1516 = vpop.f32.mrb[0].mxu0
    %1517 = vmatprep.mubr.f32.mxu0 0.0
    %1518 = vmatmul.mubr.f32.gmra.mrb[0].mxu0 %v1372
    %v1519 = vpop.f32.mrb[0].mxu0
    %v1520 = vadd.f32 0.0, %v1519
    %v1521 = vpop.f32.mrb[0].mxu0
    %1522 = vmatprep.mubr.f32.mxu0 0.0
    %1523 = vmatmul.mubr.f32.gmra.mrb[0].mxu0 %v1375
    %v1524 = vpop.f32.mrb[0].mxu0
    %v1525 = vadd.f32 0.0, %v1524
    %v1526 = vpop.f32.mrb[0].mxu0
    %1527 = vmatprep.mubr.f32.mxu0 0.0
    %1528 = vmatmul.mubr.f32.gmra.mrb[0].mxu0 %v1378
    %v1529 = vpop.f32.mrb[0].mxu0
    %v1530 = vadd.f32 0.0, %v1529
    %v1531 = vpop.f32.mrb[0].mxu0
    %1532 = vmatprep.mubr.f32.mxu0 0.0
    %1533 = vmatmul.mubr.f32.gmra.mrb[0].mxu0 %v1381
    %v1534 = vpop.f32.mrb[0].mxu0
    %v1535 = vadd.f32 0.0, %v1534
    %v1536 = vpop.f32.mrb[0].mxu0
    %1537 = vmatprep.mubr.f32.mxu0 0.0
    %1538 = vmatmul.mubr.f32.gmra.mrb[0].mxu0 %v1384
    %v1539 = vpop.f32.mrb[0].mxu0
    %v1540 = vadd.f32 0.0, %v1539
    %v1541 = vpop.f32.mrb[0].mxu0
    %1542 = vmatprep.mubr.f32.mxu0 0.0
    %1543 = vmatmul.mubr.f32.gmra.mrb[0].mxu0 %v1387
    %v1544 = vpop.f32.mrb[0].mxu0
    %v1545 = vadd.f32 0.0, %v1544
    %v1546 = vpop.f32.mrb[0].mxu0
    %1547 = vmatprep.mubr.f32.mxu0 0.0
    %1548 = vmatmul.mubr.f32.gmra.mrb[0].mxu0 %v1390
    %v1549 = vpop.f32.mrb[0].mxu0
    %v1550 = vadd.f32 0.0, %v1549
    %v1551 = vpop.f32.mrb[0].mxu0
    %1552 = vmatprep.mubr.f32.mxu0 0.0
    %1553 = vmatmul.mubr.f32.gmra.mrb[0].mxu0 %v1393
    %v1554 = vpop.f32.mrb[0].mxu0
    %v1555 = vadd.f32 0.0, %v1554
    %v1556 = vpop.f32.mrb[0].mxu0
    %1557 = vmatprep.mubr.f32.mxu0 0.0
    %1558 = vmatmul.mubr.f32.gmra.mrb[0].mxu0 %v1396
    %v1559 = vpop.f32.mrb[0].mxu0
    %v1560 = vadd.f32 0.0, %v1559
    %v1561 = vpop.f32.mrb[0].mxu0
    %1562 = vmatprep.mubr.f32.mxu0 0.0
    %1563 = vmatmul.mubr.f32.gmra.mrb[0].mxu0 %v1399
    %v1564 = vpop.f32.mrb[0].mxu0
    %v1565 = vadd.f32 0.0, %v1564
    %v1566 = vpop.f32.mrb[0].mxu0
    %1567 = vmatprep.mubr.f32.mxu0 0.0
    %1568 = vmatmul.mubr.f32.gmra.mrb[0].mxu0 %v1402
    %v1569 = vpop.f32.mrb[0].mxu0
    %v1570 = vadd.f32 0.0, %v1569
    %v1571 = vpop.f32.mrb[0].mxu0
    %1572 = vdwg.mxu0
    %v1573 = vsub.f32 %v54, %v1475
    %v1574 = vsub.f32 %v55, %v1480
    %v1575 = vsub.f32 %v56, %v1485
    %v1576 = vsub.f32 %v57, %v1490
    %v1577 = vsub.f32 %v58, %v1495
    %v1578 = vsub.f32 %v59, %v1500
    %v1579 = vsub.f32 %v60, %v1505
    %v1580 = vsub.f32 %v61, %v1510
    %v1581 = vsub.f32 %v62, %v1515
    %v1582 = vsub.f32 %v63, %v1520
    %v1583 = vsub.f32 %v64, %v1525
    %v1584 = vsub.f32 %v65, %v1530
    %v1585 = vsub.f32 %v66, %v1535
    %v1586 = vsub.f32 %v67, %v1540
    %v1587 = vsub.f32 %v68, %v1545
    %v1588 = vsub.f32 %v69, %v1550
    %v1589 = vsub.f32 %v70, %v1555
    %v1590 = vsub.f32 %v71, %v1560
    %v1591 = vsub.f32 %v72, %v1565
    %v1592 = vsub.f32 %v73, %v1570
    %v1593 = vmul.f32 %v1573, %v74
    %v1594 = vmul.f32 %v1574, %v75
    %v1595 = vmul.f32 %v1575, %v76
    %v1596 = vmul.f32 %v1576, %v77
    %v1597 = vmul.f32 %v1577, %v78
    %v1598 = vmul.f32 %v1578, %v79
    %v1599 = vmul.f32 %v1579, %v80
    %v1600 = vmul.f32 %v1580, %v81
    %v1601 = vmul.f32 %v1581, %v82
    %v1602 = vmul.f32 %v1582, %v83
    %v1603 = vmul.f32 %v1583, %v84
    %v1604 = vmul.f32 %v1584, %v85
    %v1605 = vmul.f32 %v1585, %v86
    %v1606 = vmul.f32 %v1586, %v87
    %v1607 = vmul.f32 %v1587, %v88
    %v1608 = vmul.f32 %v1588, %v89
    %v1609 = vmul.f32 %v1589, %v90
    %v1610 = vmul.f32 %v1590, %v91
    %v1611 = vmul.f32 %v1591, %v92
    %v1612 = vmul.f32 %v1592, %v93
    %v1613 = vmul.f32 %v1593, %v1593
    %v1614 = vmul.f32 %v1594, %v1594
    %v1615 = vmul.f32 %v1595, %v1595
    %v1616 = vmul.f32 %v1596, %v1596
    %v1617 = vmul.f32 %v1597, %v1597
    %v1618 = vmul.f32 %v1598, %v1598
    %v1619 = vmul.f32 %v1599, %v1599
    %v1620 = vmul.f32 %v1600, %v1600
    %v1621 = vmul.f32 %v1601, %v1601
    %v1622 = vmul.f32 %v1602, %v1602
    %v1623 = vmul.f32 %v1603, %v1603
    %v1624 = vmul.f32 %v1604, %v1604
    %v1625 = vmul.f32 %v1605, %v1605
    %v1626 = vmul.f32 %v1606, %v1606
    %v1627 = vmul.f32 %v1607, %v1607
    %v1628 = vmul.f32 %v1608, %v1608
    %v1629 = vmul.f32 %v1609, %v1609
    %v1630 = vmul.f32 %v1610, %v1610
    %v1631 = vmul.f32 %v1611, %v1611
    %v1632 = vmul.f32 %v1612, %v1612
    %v1633 = vsel %vm102, %v1613, 0.0
    %v1634 = vsel %vm102, %v1614, 0.0
    %v1635 = vadd.f32 %v1633, %v1634
    %v1636 = vsel %vm102, %v1615, 0.0
    %v1637 = vadd.f32 %v1635, %v1636
    %v1638 = vsel %vm102, %v1616, 0.0
    %v1639 = vadd.f32 %v1637, %v1638
    %v1640 = vsel %vm102, %v1617, 0.0
    %v1641 = vadd.f32 %v1639, %v1640
    %v1642 = vsel %vm102, %v1618, 0.0
    %v1643 = vadd.f32 %v1641, %v1642
    %v1644 = vsel %vm102, %v1619, 0.0
    %v1645 = vadd.f32 %v1643, %v1644
    %v1646 = vsel %vm102, %v1620, 0.0
    %v1647 = vadd.f32 %v1645, %v1646
    %v1648 = vsel %vm102, %v1621, 0.0
    %v1649 = vadd.f32 %v1647, %v1648
    %v1650 = vsel %vm102, %v1622, 0.0
    %v1651 = vadd.f32 %v1649, %v1650
    %v1652 = vsel %vm102, %v1623, 0.0
    %v1653 = vadd.f32 %v1651, %v1652
    %v1654 = vsel %vm102, %v1624, 0.0
    %v1655 = vadd.f32 %v1653, %v1654
    %v1656 = vsel %vm102, %v1625, 0.0
    %v1657 = vadd.f32 %v1655, %v1656
    %v1658 = vsel %vm102, %v1626, 0.0
    %v1659 = vadd.f32 %v1657, %v1658
    %v1660 = vsel %vm102, %v1627, 0.0
    %v1661 = vadd.f32 %v1659, %v1660
    %v1662 = vsel %vm102, %v1628, 0.0
    %v1663 = vadd.f32 %v1661, %v1662
    %v1664 = vsel %vm102, %v1629, 0.0
    %v1665 = vadd.f32 %v1663, %v1664
    %v1666 = vsel %vm102, %v1630, 0.0
    %v1667 = vadd.f32 %v1665, %v1666
    %v1668 = vsel %vm102, %v1631, 0.0
    %v1669 = vadd.f32 %v1667, %v1668
    %v1670 = vsel %vm102, %v1632, 0.0
    %v1671 = vadd.f32 %v1669, %v1670
    %1672 = vadd.xlane.f32.xlu0 %v1671
    %v1673 = vpop.xlane.xlu0 %1672
    %v1674 = vrot.slane %v1673, 4
    %v1675 = vadd.f32 %v1673, %v1674
    %v1676 = vrot.slane %v1675, 2
    %v1677 = vadd.f32 %v1675, %v1676
    %v1678 = vrot.slane %v1677, 1
    %v1679 = vadd.f32 %v1677, %v1678
    %s1680 = vtos %v1679
    %v1681 = vsel %vm102, %v74, 0.0
    %v1682 = vsel %vm102, %v75, 0.0
    %v1683 = vadd.f32 %v1681, %v1682
    %v1684 = vsel %vm102, %v76, 0.0
    %v1685 = vadd.f32 %v1683, %v1684
    %v1686 = vsel %vm102, %v77, 0.0
    %v1687 = vadd.f32 %v1685, %v1686
    %v1688 = vsel %vm102, %v78, 0.0
    %v1689 = vadd.f32 %v1687, %v1688
    %v1690 = vsel %vm102, %v79, 0.0
    %v1691 = vadd.f32 %v1689, %v1690
    %v1692 = vsel %vm102, %v80, 0.0
    %v1693 = vadd.f32 %v1691, %v1692
    %v1694 = vsel %vm102, %v81, 0.0
    %v1695 = vadd.f32 %v1693, %v1694
    %v1696 = vsel %vm102, %v82, 0.0
    %v1697 = vadd.f32 %v1695, %v1696
    %v1698 = vsel %vm102, %v83, 0.0
    %v1699 = vadd.f32 %v1697, %v1698
    %v1700 = vsel %vm102, %v84, 0.0
    %v1701 = vadd.f32 %v1699, %v1700
    %v1702 = vsel %vm102, %v85, 0.0
    %v1703 = vadd.f32 %v1701, %v1702
    %v1704 = vsel %vm102, %v86, 0.0
    %v1705 = vadd.f32 %v1703, %v1704
    %v1706 = vsel %vm102, %v87, 0.0
    %v1707 = vadd.f32 %v1705, %v1706
    %v1708 = vsel %vm102, %v88, 0.0
    %v1709 = vadd.f32 %v1707, %v1708
    %v1710 = vsel %vm102, %v89, 0.0
    %v1711 = vadd.f32 %v1709, %v1710
    %v1712 = vsel %vm102, %v90, 0.0
    %v1713 = vadd.f32 %v1711, %v1712
    %v1714 = vsel %vm102, %v91, 0.0
    %v1715 = vadd.f32 %v1713, %v1714
    %v1716 = vsel %vm102, %v92, 0.0
    %v1717 = vadd.f32 %v1715, %v1716
    %v1718 = vsel %vm102, %v93, 0.0
    %v1719 = vadd.f32 %v1717, %v1718
    %1720 = vadd.xlane.f32.xlu0 %v1719
    %v1721 = vpop.xlane.xlu0 %1720
    %v1722 = vrot.slane %v1721, 4
    %v1723 = vadd.f32 %v1721, %v1722
    %v1724 = vrot.slane %v1723, 2
    %v1725 = vadd.f32 %v1723, %v1724
    %v1726 = vrot.slane %v1725, 1
    %v1727 = vadd.f32 %v1725, %v1726
    %s1728 = vtos %v1727
    %v1729 = vstv %s1728
    %v1730 = vrcp.pop %v1729
    %s1731 = vtos %v1730
    %s1732 = smul.f32 %s1680, %s1731
    %s1733 = smul.f32 %s1732, 0.5
    %v1734 = vld [vmem:[%s9] sm:$0xff]
    %v1735 = vld [vmem:[%s9 + $0x8] sm:$0xff]
    %v1736 = vld [vmem:[%s9 + $0x10] sm:$0xf]
    %1737 = vset.pattern.permute.xlu0 0
    %1738 = vperm.xlu0 %1737, %v1734
    %v1739 = vpop.permute.xlu0 %1738
    %1740 = vset.pattern.permute.xlu0 0
    %1741 = vperm.xlu0 %1740, %v1735
    %v1742 = vpop.permute.xlu0 %1741
    %1743 = vset.pattern.permute.xlu0 0
    %1744 = vperm.xlu0 %1743, %v1736
    %v1745 = vpop.permute.xlu0 %1744
    %vm1746 = vcmp.eq.s32.totalorder %v747, %v1739
    %vm1747 = vcmp.eq.s32.totalorder %v747, %v1742
    %vm1748 = vcmp.eq.s32.totalorder %v747, %v1745
    %v1749 = vsel %vm1746, 1, 0
    %v1750 = vsel %vm1747, 1, 0
    %v1751 = vsel %vm1748, 1, 0
    %v1752 = vcvt.s32.f32 %v1749
    %v1753 = vcvt.s32.f32 %v1750
    %v1754 = vcvt.s32.f32 %v1751
    %v1755 = vld [vmem:[%s7] sm:$0xff]
    %v1756 = vld [vmem:[%s7 + $0x8] sm:$0xff]
    %v1757 = vld [vmem:[%s7 + $0x10] sm:$0xf]
    %v1759 = vsel %vm1343, %v1752, 0
    %v1762 = vsel %vm1343, %v1753, 0
    %v1765 = vsel %vm1343, %v1754, 0
    %v1768 = vsel %vm1404, %v1757, 0
    %1770 = vmatprep.subr.mxu0 0.0
    %1771 = vmatpush1.msra.mxu0 %v1755
    %1772 = vmatprep.subr.mxu0 0.0
    %1773 = vmatpush1.msra.mxu0 %v1756
    %1774 = vmatprep.subr.mxu0 0.0
    %1775 = vmatpush1.msra.mxu0 %v1768
    %1776 = vmatprep.subr.mxu0 0.0
    %1777 = vmatpush1.msra.mxu0 0.0
    %1778 = vmatprep.subr.mxu0 0.0
    %1779 = vmatpush1.msra.mxu0 0.0
    %1780 = vmatprep.subr.mxu0 0.0
    %1781 = vmatpush1.msra.mxu0 0.0
    %1782 = vmatprep.subr.mxu0 0.0
    %1783 = vmatpush1.msra.mxu0 0.0
    %1784 = vmatprep.subr.mxu0 0.0
    %1785 = vmatpush1.msra.mxu0 0.0
    %1786 = vmatprep.subr.mxu0 0.0
    %1787 = vmatpush1.msra.mxu0 0.0
    %1788 = vmatprep.subr.mxu0 0.0
    %1789 = vmatpush1.msra.mxu0 0.0
    %1790 = vmatprep.subr.mxu0 0.0
    %1791 = vmatpush1.msra.mxu0 0.0
    %1792 = vmatprep.subr.mxu0 0.0
    %1793 = vmatpush1.msra.mxu0 0.0
    %1794 = vmatprep.subr.mxu0 0.0
    %1795 = vmatpush1.msra.mxu0 0.0
    %1796 = vmatprep.subr.mxu0 0.0
    %1797 = vmatpush1.msra.mxu0 0.0
    %1798 = vmatprep.subr.mxu0 0.0
    %1799 = vmatpush1.msra.mxu0 0.0
    %1800 = vmatprep.subr.mxu0 0.0
    %1801 = vmatpush1.msra.mxu0 0.0
    %1802 = vmatprep.subr.mxu0 0.0
    %1803 = vmatpush1.msra.mxu0 0.0
    %1804 = vmatprep.subr.mxu0 0.0
    %1805 = vmatpush1.msra.mxu0 0.0
    %1806 = vmatprep.subr.mxu0 0.0
    %1807 = vmatpush1.msra.mxu0 0.0
    %1808 = vmatprep.subr.mxu0 0.0
    %1809 = vmatpush1.msra.mxu0 0.0
    %1810 = vmatprep.subr.mxu0 0.0
    %1811 = vmatpush1.msra.mxu0 0.0
    %1812 = vmatprep.subr.mxu0 0.0
    %1813 = vmatpush1.msra.mxu0 0.0
    %1814 = vmatprep.subr.mxu0 0.0
    %1815 = vmatpush1.msra.mxu0 0.0
    %1816 = vmatprep.subr.mxu0 0.0
    %1817 = vmatpush1.msra.mxu0 0.0
    %1818 = vmatprep.subr.mxu0 0.0
    %1819 = vmatpush1.msra.mxu0 0.0
    %1820 = vmatprep.subr.mxu0 0.0
    %1821 = vmatpush1.msra.mxu0 0.0
    %1822 = vmatprep.subr.mxu0 0.0
    %1823 = vmatpush1.msra.mxu0 0.0
    %1824 = vmatprep.subr.mxu0 0.0
    %1825 = vmatpush1.msra.mxu0 0.0
    %1826 = vmatprep.subr.mxu0 0.0
    %1827 = vmatpush1.msra.mxu0 0.0
    %1828 = vmatprep.subr.mxu0 0.0
    %1829 = vmatpush1.msra.mxu0 0.0
    %1830 = vmatprep.subr.mxu0 0.0
    %1831 = vmatpush1.msra.mxu0 0.0
    %1832 = vmatprep.subr.mxu0 0.0
    %1833 = vmatpush1.msra.mxu0 0.0
    %1834 = vmatprep.mubr.f32.mxu0 0.0
    %1835 = vmatmul.mubr.f32.gmra.mrb[0].mxu0 %v1759
    %v1836 = vpop.f32.mrb[0].mxu0
    %v1837 = vadd.f32 0.0, %v1836
    %v1838 = vpop.f32.mrb[0].mxu0
    %1839 = vmatprep.mubr.f32.mxu0 0.0
    %1840 = vmatmul.mubr.f32.gmra.mrb[0].mxu0 %v1762
    %v1841 = vpop.f32.mrb[0].mxu0
    %v1842 = vadd.f32 0.0, %v1841
    %v1843 = vpop.f32.mrb[0].mxu0
    %1844 = vmatprep.mubr.f32.mxu0 0.0
    %1845 = vmatmul.mubr.f32.gmra.mrb[0].mxu0 %v1765
    %v1846 = vpop.f32.mrb[0].mxu0
    %v1847 = vadd.f32 0.0, %v1846
    %v1848 = vpop.f32.mrb[0].mxu0
    %1849 = vdwg.mxu0
    %v1850 = vld [vmem:[%s10] sm:$0x1]
    %v1851 = vlaneseq
    %v1852 = vshrl.u32 %v1851, 7
    %v1853 = vsub.s32 0, %v1852
    %v1854 = vrot.slane %v1850, %v1853
    %vm1855 = vcmp.eq.s32.totalorder %v740, %v1854
    %vm1856 = vcmp.eq.s32.totalorder %v741, %v1854
    %vm1857 = vcmp.eq.s32.totalorder %v742, %v1854
    %v1858 = vsel %vm1855, 1, 0
    %v1859 = vsel %vm1856, 1, 0
    %v1860 = vsel %vm1857, 1, 0
    %v1861 = vcvt.s32.f32 %v1858
    %v1862 = vcvt.s32.f32 %v1859
    %v1863 = vcvt.s32.f32 %v1860
    %v1864 = vsel %vm1343, %v1861, -inf
    %1865 = vmax.xlane.f32.xlu0 %v1864
    %v1866 = vpop.xlane.xlu0 %1865
    %v1867 = vsel %vm1343, %v1862, -inf
    %1868 = vmax.xlane.f32.xlu0 %v1867
    %v1869 = vpop.xlane.xlu0 %1868
    %vm1870 = vcmask 158720
    %v1871 = vsel %vm1870, %v1863, -inf
    %1872 = vmax.xlane.f32.xlu0 %v1871
    %v1873 = vpop.xlane.xlu0 %1872
    %vm1874 = vcmp.eq.s32.totalorder %v740, %v747
    %vm1875 = vcmp.eq.s32.totalorder %v741, %v747
    %vm1876 = vcmp.eq.s32.totalorder %v742, %v747
    %vm1877 = vcmp.gt.f32.partialorder %v1866, 0.0
    %vm1878 = vcmp.gt.f32.partialorder %v1869, 0.0
    %vm1879 = vcmp.gt.f32.partialorder %v1873, 0.0
    %v1880 = vsel %vm1877, 1, 0
    %v1881 = vsel %vm1878, 1, 0
    %v1882 = vsel %vm1879, 1, 0
    %vm1883 = vcmp.eq.s32.totalorder %v1880, 1
    %vm1884 = vcmp.eq.s32.totalorder %v1881, 1
    %vm1885 = vcmp.eq.s32.totalorder %v1882, 1
    %vm1886 = vmand %vm1874, %vm1883
    %vm1887 = vmand %vm1875, %vm1884
    %vm1888 = vmand %vm1876, %vm1885
    %v1889 = vsel %vm1886, -1e+30, %v1837
    %v1890 = vsel %vm1887, -1e+30, %v1842
    %v1891 = vsel %vm1888, -1e+30, %v1847
    %v1892 = vld [vmem:[%s11] sm:$0xff]
    %v1893 = vld [vmem:[%s11 + $0x8] sm:$0xff]
    %v1894 = vld [vmem:[%s11 + $0x10] sm:$0xf]
    %v1895 = vadd.f32 %v1889, %v1892
    %v1896 = vadd.f32 %v1890, %v1893
    %v1897 = vadd.f32 %v1891, %v1894
    %vm1898 = vcmask 130048
    %v1899 = vsel %vm1898, %v1895, -inf
    %1900 = vmax.xlane.f32.xlu0 %v1899
    %v1901 = vpop.xlane.xlu0 %1900
    %v1902 = vsel %vm1898, %v1896, -inf
    %1903 = vmax.xlane.f32.xlu0 %v1902
    %v1904 = vpop.xlane.xlu0 %1903
    %vm1905 = vcmask 125952
    %v1906 = vsel %vm1905, %v1897, -inf
    %1907 = vmax.xlane.f32.xlu0 %v1906
    %v1908 = vpop.xlane.xlu0 %1907
    %v1909 = vsub.f32 %v1895, %v1901
    %v1910 = vsub.f32 %v1896, %v1904
    %v1911 = vsub.f32 %v1897, %v1908
    %v1912 = vmul.f32 %v1909, 1.442695
    %v1913 = vpow.pop %v1912
    %v1914 = vmul.f32 %v1910, 1.442695
    %v1915 = vpow.pop %v1914
    %v1916 = vmul.f32 %v1911, 1.442695
    %v1917 = vpow.pop %v1916
    %v1918 = vsel %vm1898, %v1913, 0.0
    %1919 = vadd.xlane.f32.xlu0 %v1918
    %v1920 = vpop.xlane.xlu0 %1919
    %v1921 = vsel %vm1898, %v1915, 0.0
    %1922 = vadd.xlane.f32.xlu0 %v1921
    %v1923 = vpop.xlane.xlu0 %1922
    %v1924 = vsel %vm1905, %v1917, 0.0
    %1925 = vadd.xlane.f32.xlu0 %v1924
    %v1926 = vpop.xlane.xlu0 %1925
    %v1927 = vrcp.pop %v1920
    %v1928 = vmul.f32 %v1913, %v1927
    %v1929 = vrcp.pop %v1923
    %v1930 = vmul.f32 %v1915, %v1929
    %v1931 = vrcp.pop %v1926
    %v1932 = vmul.f32 %v1917, %v1931
    %v1933 = vld [vmem:[%s8] sm:$0xff]
    %v1934 = vld [vmem:[%s8 + $0x8] sm:$0xff]
    %v1936 = vsel %vm1898, %v1928, 0
    %v1939 = vsel %vm1898, %v1930, 0
    %v1942 = vsel %vm1898, %v1932, 0
    %1944 = vmatprep.subr.mxu0 0.0
    %1945 = vmatpush1.msra.mxu0 %v1933
    %1946 = vmatprep.subr.mxu0 0.0
    %1947 = vmatpush1.msra.mxu0 %v1934
    %1948 = vmatprep.subr.mxu0 0.0
    %1949 = vmatpush1.msra.mxu0 0.0
    %1950 = vmatprep.subr.mxu0 0.0
    %1951 = vmatpush1.msra.mxu0 0.0
    %1952 = vmatprep.subr.mxu0 0.0
    %1953 = vmatpush1.msra.mxu0 0.0
    %1954 = vmatprep.subr.mxu0 0.0
    %1955 = vmatpush1.msra.mxu0 0.0
    %1956 = vmatprep.subr.mxu0 0.0
    %1957 = vmatpush1.msra.mxu0 0.0
    %1958 = vmatprep.subr.mxu0 0.0
    %1959 = vmatpush1.msra.mxu0 0.0
    %1960 = vmatprep.subr.mxu0 0.0
    %1961 = vmatpush1.msra.mxu0 0.0
    %1962 = vmatprep.subr.mxu0 0.0
    %1963 = vmatpush1.msra.mxu0 0.0
    %1964 = vmatprep.subr.mxu0 0.0
    %1965 = vmatpush1.msra.mxu0 0.0
    %1966 = vmatprep.subr.mxu0 0.0
    %1967 = vmatpush1.msra.mxu0 0.0
    %1968 = vmatprep.subr.mxu0 0.0
    %1969 = vmatpush1.msra.mxu0 0.0
    %1970 = vmatprep.subr.mxu0 0.0
    %1971 = vmatpush1.msra.mxu0 0.0
    %1972 = vmatprep.subr.mxu0 0.0
    %1973 = vmatpush1.msra.mxu0 0.0
    %1974 = vmatprep.subr.mxu0 0.0
    %1975 = vmatpush1.msra.mxu0 0.0
    %1976 = vmatprep.subr.mxu0 0.0
    %1977 = vmatpush1.msra.mxu0 0.0
    %1978 = vmatprep.subr.mxu0 0.0
    %1979 = vmatpush1.msra.mxu0 0.0
    %1980 = vmatprep.subr.mxu0 0.0
    %1981 = vmatpush1.msra.mxu0 0.0
    %1982 = vmatprep.subr.mxu0 0.0
    %1983 = vmatpush1.msra.mxu0 0.0
    %1984 = vmatprep.subr.mxu0 0.0
    %1985 = vmatpush1.msra.mxu0 0.0
    %1986 = vmatprep.subr.mxu0 0.0
    %1987 = vmatpush1.msra.mxu0 0.0
    %1988 = vmatprep.subr.mxu0 0.0
    %1989 = vmatpush1.msra.mxu0 0.0
    %1990 = vmatprep.subr.mxu0 0.0
    %1991 = vmatpush1.msra.mxu0 0.0
    %1992 = vmatprep.subr.mxu0 0.0
    %1993 = vmatpush1.msra.mxu0 0.0
    %1994 = vmatprep.subr.mxu0 0.0
    %1995 = vmatpush1.msra.mxu0 0.0
    %1996 = vmatprep.subr.mxu0 0.0
    %1997 = vmatpush1.msra.mxu0 0.0
    %1998 = vmatprep.subr.mxu0 0.0
    %1999 = vmatpush1.msra.mxu0 0.0
    %2000 = vmatprep.subr.mxu0 0.0
    %2001 = vmatpush1.msra.mxu0 0.0
    %2002 = vmatprep.subr.mxu0 0.0
    %2003 = vmatpush1.msra.mxu0 0.0
    %2004 = vmatprep.subr.mxu0 0.0
    %2005 = vmatpush1.msra.mxu0 0.0
    %2006 = vmatprep.subr.mxu0 0.0
    %2007 = vmatpush1.msra.mxu0 0.0
    %2008 = vmatprep.mubr.f32.mxu0 0.0
    %2009 = vmatmul.mubr.f32.gmra.mrb[0].mxu0 %v1936
    %v2010 = vpop.f32.mrb[0].mxu0
    %v2011 = vadd.f32 0.0, %v2010
    %v2012 = vpop.f32.mrb[0].mxu0
    %2013 = vmatprep.mubr.f32.mxu0 0.0
    %2014 = vmatmul.mubr.f32.gmra.mrb[0].mxu0 %v1939
    %v2015 = vpop.f32.mrb[0].mxu0
    %v2016 = vadd.f32 0.0, %v2015
    %v2017 = vpop.f32.mrb[0].mxu0
    %2018 = vmatprep.mubr.f32.mxu0 0.0
    %2019 = vmatmul.mubr.f32.gmra.mrb[0].mxu0 %v1942
    %v2020 = vpop.f32.mrb[0].mxu0
    %v2021 = vadd.f32 0.0, %v2020
    %v2022 = vpop.f32.mrb[0].mxu0
    %2023 = vdwg.mxu0
    %v2024 = vsub.f32 %v1232, %v2011
    %v2025 = vsub.f32 %v1234, %v2016
    %v2026 = vsub.f32 %v1236, %v2021
    %v2027 = vmul.f32 %v2024, %v2024
    %v2028 = vmul.f32 %v2025, %v2025
    %v2029 = vmul.f32 %v2026, %v2026
    %v2030 = vadd.f32 %v2027, %v2028
    %v2031 = vsel %vm1404, %v2029, 0.0
    %v2032 = vadd.f32 %v2030, %v2031
    %2033 = vadd.xlane.f32.xlu0 %v2032
    %v2034 = vpop.xlane.xlu0 %2033
    %v2035 = vrot.slane %v2034, 4
    %v2036 = vadd.f32 %v2034, %v2035
    %v2037 = vrot.slane %v2036, 2
    %v2038 = vadd.f32 %v2036, %v2037
    %v2039 = vrot.slane %v2038, 1
    %v2040 = vadd.f32 %v2038, %v2039
    %s2041 = vtos %v2040
    %v2042 = vrcp.pop 2560.0
    %s2043 = vtos %v2042
    %s2044 = smul.f32 %s2041, %s2043
    %v2045 = vmul.f32 %v1928, %v1928
    %v2046 = vmul.f32 %v1930, %v1930
    %v2047 = vmul.f32 %v1932, %v1932
    %v2048 = vsel %vm1898, %v2045, 0.0
    %v2049 = vsel %vm1898, %v2046, 0.0
    %v2050 = vadd.f32 %v2048, %v2049
    %v2051 = vsel %vm1905, %v2047, 0.0
    %v2052 = vadd.f32 %v2050, %v2051
    %2053 = vadd.xlane.f32.xlu0 %v2052
    %v2054 = vpop.xlane.xlu0 %2053
    %v2055 = vrot.slane %v2054, 4
    %v2056 = vadd.f32 %v2054, %v2055
    %v2057 = vrot.slane %v2056, 2
    %v2058 = vadd.f32 %v2056, %v2057
    %v2059 = vrot.slane %v2058, 1
    %v2060 = vadd.f32 %v2058, %v2059
    %s2061 = vtos %v2060
    %v2062 = vrcp.pop 320.0
    %s2063 = vtos %v2062
    %s2064 = smul.f32 %s2061, %s2063
    %s2065 = smul.f32 %s2064, 0.1
    %s2066 = sadd.f32 %s2044, %s2065
    %v2067 = vld [vmem:[%s13] sm:$0xff]
    %v2068 = vld [vmem:[%s13 + $0x8] sm:$0xff]
    %2069 = vmatprep.subr.mxu0 0.0
    %2070 = vmatpush1.msra.mxu0 %v2067
    %2071 = vmatprep.subr.mxu0 0.0
    %2072 = vmatpush1.msra.mxu0 %v2068
    %2073 = vmatprep.subr.mxu0 0.0
    %2074 = vmatpush1.msra.mxu0 0.0
    %2075 = vmatprep.subr.mxu0 0.0
    %2076 = vmatpush1.msra.mxu0 0.0
    %2077 = vmatprep.subr.mxu0 0.0
    %2078 = vmatpush1.msra.mxu0 0.0
    %2079 = vmatprep.subr.mxu0 0.0
    %2080 = vmatpush1.msra.mxu0 0.0
    %2081 = vmatprep.subr.mxu0 0.0
    %2082 = vmatpush1.msra.mxu0 0.0
    %2083 = vmatprep.subr.mxu0 0.0
    %2084 = vmatpush1.msra.mxu0 0.0
    %2085 = vmatprep.subr.mxu0 0.0
    %2086 = vmatpush1.msra.mxu0 0.0
    %2087 = vmatprep.subr.mxu0 0.0
    %2088 = vmatpush1.msra.mxu0 0.0
    %2089 = vmatprep.subr.mxu0 0.0
    %2090 = vmatpush1.msra.mxu0 0.0
    %2091 = vmatprep.subr.mxu0 0.0
    %2092 = vmatpush1.msra.mxu0 0.0
    %2093 = vmatprep.subr.mxu0 0.0
    %2094 = vmatpush1.msra.mxu0 0.0
    %2095 = vmatprep.subr.mxu0 0.0
    %2096 = vmatpush1.msra.mxu0 0.0
    %2097 = vmatprep.subr.mxu0 0.0
    %2098 = vmatpush1.msra.mxu0 0.0
    %2099 = vmatprep.subr.mxu0 0.0
    %2100 = vmatpush1.msra.mxu0 0.0
    %2101 = vmatprep.subr.mxu0 0.0
    %2102 = vmatpush1.msra.mxu0 0.0
    %2103 = vmatprep.subr.mxu0 0.0
    %2104 = vmatpush1.msra.mxu0 0.0
    %2105 = vmatprep.subr.mxu0 0.0
    %2106 = vmatpush1.msra.mxu0 0.0
    %2107 = vmatprep.subr.mxu0 0.0
    %2108 = vmatpush1.msra.mxu0 0.0
    %2109 = vmatprep.subr.mxu0 0.0
    %2110 = vmatpush1.msra.mxu0 0.0
    %2111 = vmatprep.subr.mxu0 0.0
    %2112 = vmatpush1.msra.mxu0 0.0
    %2113 = vmatprep.subr.mxu0 0.0
    %2114 = vmatpush1.msra.mxu0 0.0
    %2115 = vmatprep.subr.mxu0 0.0
    %2116 = vmatpush1.msra.mxu0 0.0
    %2117 = vmatprep.subr.mxu0 0.0
    %2118 = vmatpush1.msra.mxu0 0.0
    %2119 = vmatprep.subr.mxu0 0.0
    %2120 = vmatpush1.msra.mxu0 0.0
    %2121 = vmatprep.subr.mxu0 0.0
    %2122 = vmatpush1.msra.mxu0 0.0
    %2123 = vmatprep.subr.mxu0 0.0
    %2124 = vmatpush1.msra.mxu0 0.0
    %2125 = vmatprep.subr.mxu0 0.0
    %2126 = vmatpush1.msra.mxu0 0.0
    %2127 = vmatprep.subr.mxu0 0.0
    %2128 = vmatpush1.msra.mxu0 0.0
    %2129 = vmatprep.subr.mxu0 0.0
    %2130 = vmatpush1.msra.mxu0 0.0
    %2131 = vmatprep.subr.mxu0 0.0
    %2132 = vmatpush1.msra.mxu0 0.0
    %2133 = vmatprep.mubr.f32.mxu0 0.0
    %2134 = vmatmul.mubr.f32.gmra.mrb[0].mxu0 %v1936
    %v2135 = vpop.f32.mrb[0].mxu0
    %v2136 = vadd.f32 0.0, %v2135
    %v2137 = vpop.f32.mrb[0].mxu0
    %2138 = vmatprep.mubr.f32.mxu0 0.0
    %2139 = vmatmul.mubr.f32.gmra.mrb[0].mxu0 %v1939
    %v2140 = vpop.f32.mrb[0].mxu0
    %v2141 = vadd.f32 0.0, %v2140
    %v2142 = vpop.f32.mrb[0].mxu0
    %2143 = vmatprep.mubr.f32.mxu0 0.0
    %2144 = vmatmul.mubr.f32.gmra.mrb[0].mxu0 %v1942
    %v2145 = vpop.f32.mrb[0].mxu0
    %v2146 = vadd.f32 0.0, %v2145
    %v2147 = vpop.f32.mrb[0].mxu0
    %2148 = vdwg.mxu0
    %v2149 = vld [vmem:[%s12] sm:$0xff]
    %v2150 = vld [vmem:[%s12 + $0x8] sm:$0xff]
    %v2151 = vld [vmem:[%s12 + $0x10] sm:$0xf]
    %v2152 = vsub.f32 %v2149, %v2136
    %v2153 = vsub.f32 %v2150, %v2141
    %v2154 = vsub.f32 %v2151, %v2146
    %v2155 = vmul.f32 %v2152, %v2152
    %v2156 = vmul.f32 %v2153, %v2153
    %v2157 = vmul.f32 %v2154, %v2154
    %v2158 = vld [vmem:[%s14] sm:$0xff]
    %v2159 = vld [vmem:[%s14 + $0x8] sm:$0xff]
    %v2160 = vld [vmem:[%s14 + $0x10] sm:$0xf]
    %2162 = vset.pattern.permute.xlu0 0
    %2163 = vperm.xlu0 %2162, %v2158
    %v2164 = vpop.permute.xlu0 %2163
    %2167 = vset.pattern.permute.xlu0 0
    %2168 = vperm.xlu0 %2167, %v2159
    %v2169 = vpop.permute.xlu0 %2168
    %2172 = vset.pattern.permute.xlu0 0
    %2173 = vperm.xlu0 %2172, %v2160
    %v2174 = vpop.permute.xlu0 %2173
    %v2176 = vmul.f32 %v2155, %v2164
    %v2177 = vmul.f32 %v2156, %v2169
    %v2178 = vmul.f32 %v2157, %v2174
    %vm2179 = vcmask 31744
    %v2180 = vsel %vm2179, %v2176, 0.0
    %v2181 = vsel %vm2179, %v2177, 0.0
    %v2182 = vadd.f32 %v2180, %v2181
    %vm2183 = vcmask 27648
    %v2184 = vsel %vm2183, %v2178, 0.0
    %v2185 = vadd.f32 %v2182, %v2184
    %2186 = vadd.xlane.f32.xlu0 %v2185
    %v2187 = vpop.xlane.xlu0 %2186
    %v2188 = vrot.slane %v2187, 4
    %v2189 = vadd.f32 %v2187, %v2188
    %v2190 = vrot.slane %v2189, 2
    %v2191 = vadd.f32 %v2189, %v2190
    %v2192 = vrot.slane %v2191, 1
    %v2193 = vadd.f32 %v2191, %v2192
    %s2194 = vtos %v2193
    %v2195 = vsel %vm629, %v2158, 0.0
    %v2196 = vsel %vm629, %v2159, 0.0
    %v2197 = vadd.f32 %v2195, %v2196
    %vm2198 = vcmask 3072
    %v2199 = vsel %vm2198, %v2160, 0.0
    %v2200 = vadd.f32 %v2197, %v2199
    %2201 = vadd.xlane.f32.xlu0 %v2200
    %v2202 = vpop.xlane.xlu0 %2201
    %v2203 = vrot.slane %v2202, 4
    %v2204 = vadd.f32 %v2202, %v2203
    %v2205 = vrot.slane %v2204, 2
    %v2206 = vadd.f32 %v2204, %v2205
    %v2207 = vrot.slane %v2206, 1
    %v2208 = vadd.f32 %v2206, %v2207
    %s2209 = vtos %v2208
    %v2210 = vstv %s2209
    %v2211 = vrcp.pop %v2210
    %s2212 = vtos %v2211
    %s2213 = smul.f32 %s2194, %s2212
    %s2214 = smul.f32 %s2213, 0.3
    %s2215 = sadd.f32 %s2066, %s1733
    %s2216 = sadd.f32 %s2215, %s2214
    %v2217 = vstv %s2216
    %vm2218 = vcmask 0
    %2219 = vst.msk [vmem:[#allocation2] sm:$0x1] %vm2218, %v2217
    // Predicated region
    $region62: #{tpu_custom_call.1} parent=1 // pred_check
      _
    $region63: #{tpu_custom_call.1} parent=1 // pred_check_branch
      %2221 = sbr.rel (0) target = $region65
    $region64: #{tpu_custom_call.1} parent=1 // pred_region
      %s2223 = ssub.s32 16, 16
      %2224 = vsyncadd [#allocation3], %s2223
      %s2226 = sshll.u32 [#allocation2], 4
      %s2227 = int_to_ptr.vmem [resolvable:$true] %s2226
      %2229 = dma.vmem_to_hbm [thread:$0]  %s2227, 16, %s15, [#allocation3]
    $region65: #{tpu_custom_call.1} parent=1 // pred_fallthru
      _
    // Predicated region
    $region66: #{tpu_custom_call.1} parent=1 // pred_check
      _
    $region67: #{tpu_custom_call.1} parent=1 // pred_check_branch
      %2231 = sbr.rel (0) target = $region69
    $region68: #{tpu_custom_call.1} parent=1 // pred_region
      %s2233 = ssub.s32 384, 384
      %2234 = vsyncadd [#allocation5], %s2233
      %s2235 = sshll.u32 [#allocation4], 4
      %s2236 = int_to_ptr.vmem [resolvable:$true] %s2235
      %2241 = dma.vmem_to_hbm [thread:$0]  %s2236, 384, %s16, [#allocation5], 128, 128, 8
    $region69: #{tpu_custom_call.1} parent=1 // pred_fallthru
      _
    // Predicated region
    $region70: #{tpu_custom_call.1} parent=1 // pred_check
      _
    $region71: #{tpu_custom_call.1} parent=1 // pred_check_branch
      %2243 = sbr.rel (0) target = $region73
    $region72: #{tpu_custom_call.1} parent=1 // pred_region
      %2244 = dma.done [#allocation3], 16
    $region73: #{tpu_custom_call.1} parent=1 // pred_fallthru
      _
    // Predicated region
    $region74: #{tpu_custom_call.1} parent=1 // pred_check
      _
    $region75: #{tpu_custom_call.1} parent=1 // pred_check_branch
      %2246 = sbr.rel (0) target = $region77
    $region76: #{tpu_custom_call.1} parent=1 // pred_region
      %2247 = dma.done [#allocation5], 384
    $region77: #{tpu_custom_call.1} parent=1 // pred_fallthru
      _
    %2248 = vsyncpa [#allocation3], 1
    %2249 = vsyncpa [#allocation5], 1

</llo_original>
